<compile_context>
chip_gen: v7x
topology: tpu7x:2x2x1
jax: 0.10.0
libtpu: 0.0.40
codegen_flags: <defaults>
</compile_context>

<pallas_src>
import jax
import jax.numpy as jnp
from jax.experimental import pallas as pl
from jax.experimental.pallas import tpu as pltpu

# ----------------------------- config (small, module-consistent) --------------
B = 2            # batch
Q = 8            # num queries
HIDDEN = 32      # hidden_dim == d_model
MASK_DIM = 32    # mask_dim (288 in the real model; shrunk for the test)
LEVELS = 2       # num_feature_levels
H = W = 16
HW = H * W
CIN = HIDDEN * LEVELS   # input channels of mask_features 1x1 conv
NUM_DEC_LAYERS = 3
EPS = 1e-5

# Tuning knobs.
#  - HW_TILE: 128 at test size so the (B, HW_tiles) pipeline + scratch caching
#    is actually exercised (2 tiles).  Production: ~2048 on v7x (keep
#    2 bufs x (CIN+MASK_DIM+2Q) x HW_TILE x bytes under ~40-48 MiB),
#    ~4096-8192 on v6e/v5e.
#  - VMEM_LIMIT: 48 MiB is safe on v7x (64 MiB physical); raise to ~96-100 MiB
#    on v6e/v5e at production tile sizes.
#  - MXU_DTYPE: flip to jnp.bfloat16 on v6e/v7x at production sizes (operands
#    are cast in the wrapper, so HBM traffic halves too).  f32 kept here so the
#    reference check is tight.
HW_TILE = 128
VMEM_LIMIT = 48 << 20
MXU_DTYPE = jnp.float32


# ------------- fused kernel: (once) LN + mask-embed MLP ; (per tile) conv + einsum
def fused_heads_kernel(hs_ref, x_ref, wm_ref, bm_ref, g_ref, be_ref,
                       w1_ref, b1_ref, w2_ref, b2_ref,
                       w3a_ref, b3a_ref, w3b_ref, b3b_ref,
                       amf_ref, masks_ref, me_sc):
    # hs_ref:    [1, Q, HIDDEN]        one batch element of hs[-1] (const over t)
    # x_ref:     [1, CIN, HW_TILE]     FPN-features tile (NCHW flattened)
    # wm_ref:    [MASK_DIM, CIN]       mask_features conv weight (out, in)
    # bm_ref:    [MASK_DIM, 1]
    # w3a/b3a:   first MASK_DIM output columns of the MLP's last layer
    # w3b/b3b:   second MASK_DIM output columns
    # amf_ref:   [1, MASK_DIM, HW_TILE] all_mask_features tile (lane-dense)
    # masks_ref: [1, Q, 2, HW_TILE]     pred-mask tile (stack axis already in place)
    # me_sc:     [2*Q, MASK_DIM] VMEM   cached row-stacked mask embeds
    t = pl.program_id(1)
    f32 = jnp.float32

    # --- decoder_norm + mask_embed MLP: once per batch element, cached --------
    @pl.when(t == 0)
    def _():
        h = hs_ref[0].astype(f32)                        # [Q, HIDDEN]
        mu = jnp.mean(h, axis=-1, keepdims=True)
        var = jnp.mean((h - mu) ** 2, axis=-1, keepdims=True)
        xn = ((h - mu) * jax.lax.rsqrt(var + EPS) * g_ref[...] + be_ref[...])
        xn = xn.astype(w1_ref.dtype)
        h1 = jnp.maximum(
            jnp.dot(xn, w1_ref[...], preferred_element_type=f32) + b1_ref[...],
            0.0).astype(w2_ref.dtype)
        h2 = jnp.maximum(
            jnp.dot(h1, w2_ref[...], preferred_element_type=f32) + b2_ref[...],
            0.0).astype(w3a_ref.dtype)
        me0 = jnp.dot(h2, w3a_ref[...], preferred_element_type=f32) + b3a_ref[...]
        me1 = jnp.dot(h2, w3b_ref[...], preferred_element_type=f32) + b3b_ref[...]
        # Row-stack the two halves -> one MXU pass per tile below.
        me_sc[0:Q, :] = me0.astype(me_sc.dtype)
        me_sc[Q:2 * Q, :] = me1.astype(me_sc.dtype)

    # --- mask_features 1x1 conv on this HW tile: [M, CIN] @ [CIN, HW_TILE] ----
    feat = jnp.dot(wm_ref[...], x_ref[0], preferred_element_type=f32) + bm_ref[...]
    amf_ref[0] = feat.astype(amf_ref.dtype)              # lane-dense unmasked vst

    # --- both einsum('bqc,bchw->bqhw') halves in ONE dot: [2Q, M] @ [M, HW_TILE]
    mm = jnp.dot(me_sc[...], feat.astype(me_sc.dtype), preferred_element_type=f32)
    masks_ref[0, :, 0, :] = mm[0:Q, :]                   # torch.stack(axis=2) slot 0
    masks_ref[0, :, 1, :] = mm[Q:2 * Q, :]               # torch.stack(axis=2) slot 1


def detr_segm_heads(hs_layer, feat_cat, p):
    """hs_layer: [B, Q, HIDDEN]; feat_cat: [B, CIN, H, W] (NCHW)
       returns (all_mask_features [B, MASK_DIM, H, W], pred_masks [B, Q, 2, H, W])."""
    Bv = hs_layer.shape[0]
    Hh, Ww = feat_cat.shape[2], feat_cat.shape[3]
    hw = Hh * Ww
    hw_pad = pl.cdiv(hw, HW_TILE) * HW_TILE
    n_t = hw_pad // HW_TILE

    x_flat = feat_cat.reshape(Bv, CIN, hw)               # free reshape; NCHW direct
    if hw_pad != hw:
        # keep every feat/amf/masks store lane-dense & unmasked; sliced off below
        x_flat = jnp.pad(x_flat, ((0, 0), (0, 0), (0, hw_pad - hw)))

    mxu = MXU_DTYPE
    # Cast MXU operands in the wrapper (bf16 at production sizes halves DMA bytes).
    hs_in = hs_layer.astype(mxu)
    x_in = x_flat.astype(mxu)
    conv_w = p["conv_w"].astype(mxu)
    w1 = p["w1"].astype(mxu)
    w2 = p["w2"].astype(mxu)
    # Split the last MLP layer at the MASK_DIM boundary at trace time -> no
    # lane-misaligned in-kernel slice of the [Q, 2*MASK_DIM] embed.
    w3a = p["w3"][:, :MASK_DIM].astype(mxu)
    w3b = p["w3"][:, MASK_DIM:].astype(mxu)
    b3a = p["b3"][:MASK_DIM].reshape(1, MASK_DIM)
    b3b = p["b3"][MASK_DIM:].reshape(1, MASK_DIM)

    def full(shape):
        return pl.BlockSpec(shape, lambda b, t, _n=len(shape): (0,) * _n)

    amf, masks = pl.pallas_call(
        fused_heads_kernel,
        out_shape=(jax.ShapeDtypeStruct((Bv, MASK_DIM, hw_pad), jnp.float32),
                   jax.ShapeDtypeStruct((Bv, Q, 2, hw_pad), jnp.float32)),
        grid=(Bv, n_t),
        in_specs=[
            pl.BlockSpec((1, Q, HIDDEN), lambda b, t: (b, 0, 0)),      # hs (const over t)
            # TODO(synk): if xprof shows exposed x DMA at production sizes, add
            # pipeline_mode=pl.Buffered(3) here (drop back to 2 on v7x if VMEM-tight).
            pl.BlockSpec((1, CIN, HW_TILE), lambda b, t: (b, 0, t)),   # x tile
            full((MASK_DIM, CIN)),                                     # conv weight
            full((MASK_DIM, 1)),                                       # conv bias
            full((1, HIDDEN)),                                         # LN gamma
            full((1, HIDDEN)),                                         # LN beta
            full((HIDDEN, HIDDEN)),                                    # MLP W1
            full((1, HIDDEN)),                                         # MLP b1
            full((HIDDEN, HIDDEN)),                                    # MLP W2
            full((1, HIDDEN)),                                         # MLP b2
            full((HIDDEN, MASK_DIM)),                                  # MLP W3 (half a)
            full((1, MASK_DIM)),                                       # MLP b3 (half a)
            full((HIDDEN, MASK_DIM)),                                  # MLP W3 (half b)
            full((1, MASK_DIM)),                                       # MLP b3 (half b)
        ],
        out_specs=(pl.BlockSpec((1, MASK_DIM, HW_TILE), lambda b, t: (b, 0, t)),
                   pl.BlockSpec((1, Q, 2, HW_TILE), lambda b, t: (b, 0, 0, t))),
        scratch_shapes=[pltpu.VMEM((2 * Q, MASK_DIM), mxu)],           # cached embeds
        compiler_params=pltpu.CompilerParams(
            # batch -> 2 TCs on v7x; HW sequential so the me_sc cache is legal
            dimension_semantics=("parallel", "arbitrary"),
            vmem_limit_bytes=VMEM_LIMIT),
    )(hs_in, x_in,
      conv_w, p["conv_b"].reshape(MASK_DIM, 1),
      p["ln_g"].reshape(1, HIDDEN), p["ln_b"].reshape(1, HIDDEN),
      w1, p["b1"].reshape(1, HIDDEN),
      w2, p["b2"].reshape(1, HIDDEN),
      w3a, b3a, w3b, b3b)

    if hw_pad != hw:
        amf = amf[:, :, :hw]
        masks = masks[:, :, :, :hw]
    all_mask_features = amf.reshape(Bv, MASK_DIM, Hh, Ww)              # free reshape
    pred_masks = masks.reshape(Bv, Q, 2, Hh, Ww)                       # == torch.stack(axis=2)
    return all_mask_features, pred_masks


# ----------------------------- pure-JAX reference ------------------------------
def reference(hs_layer, feat_cat, p):
    amf = (jnp.einsum("oc,bchw->bohw", p["conv_w"], feat_cat)
           + p["conv_b"][None, :, None, None])                         # [B, M, H, W]
    mu = jnp.mean(hs_layer, -1, keepdims=True)
    var = jnp.mean((hs_layer - mu) ** 2, -1, keepdims=True)
    xn = (hs_layer - mu) / jnp.sqrt(var + EPS) * p["ln_g"] + p["ln_b"]
    h1 = jax.nn.relu(xn @ p["w1"] + p["b1"])
    h2 = jax.nn.relu(h1 @ p["w2"] + p["b2"])
    me = h2 @ p["w3"] + p["b3"]
    m1 = jnp.einsum("bqc,bchw->bqhw", me[:, :, :MASK_DIM], amf)
    m2 = jnp.einsum("bqc,bchw->bqhw", me[:, :, MASK_DIM:], amf)
    return amf, jnp.stack((m1, m2), axis=2)


# ----------------------------- driver ------------------------------------------
if __name__ == "__main__":
    key = jax.random.PRNGKey(0)
    ks = jax.random.split(key, 12)

    # simulated outputs of super().forward():
    #   hs: [num_decoder_layers, B, Q, HIDDEN]
    #   feat_cat: multi-level FPN features at d_model, concatenated on channels.
    # TODO(synk): backbone/transformer super().forward(), FPN lateral/output
    # conv+GroupNorm stacks and img_encoder are upstream of this module's hot
    # path and are simulated by the random tensors below.
    hs = jax.random.normal(ks[0], (NUM_DEC_LAYERS, B, Q, HIDDEN), jnp.float32)
    feat_cat = jax.random.normal(ks[1], (B, CIN, H, W), jnp.float32)

    # deterministic parameters (shapes from __init__; conv weight in (out, in))
    params = {
        "conv_w": 0.1 * jax.random.normal(ks[2], (MASK_DIM, CIN), jnp.float32),
        "conv_b": 0.1 * jax.random.normal(ks[3], (MASK_DIM,), jnp.float32),
        "ln_g": jnp.ones((HIDDEN,), jnp.float32),
        "ln_b": jnp.zeros((HIDDEN,), jnp.float32),
        "w1": 0.1 * jax.random.normal(ks[4], (HIDDEN, HIDDEN), jnp.float32),
        "b1": 0.1 * jax.random.normal(ks[5], (HIDDEN,), jnp.float32),
        "w2": 0.1 * jax.random.normal(ks[6], (HIDDEN, HIDDEN), jnp.float32),
        "b2": 0.1 * jax.random.normal(ks[7], (HIDDEN,), jnp.float32),
        "w3": 0.1 * jax.random.normal(ks[8], (HIDDEN, 2 * MASK_DIM), jnp.float32),
        "b3": 0.1 * jax.random.normal(ks[9], (2 * MASK_DIM,), jnp.float32),
    }

    # fused Pallas path: mask_features conv + forward_prediction_heads(hs[-1])
    all_mask_features, pred_masks = detr_segm_heads(hs[-1], feat_cat, params)
    pred_masks = jax.block_until_ready(pred_masks)

    # correctness check against plain-JAX reference
    amf_ref, masks_ref = reference(hs[-1], feat_cat, params)
    assert pred_masks.shape == (B, Q, 2, H, W)
    assert jnp.allclose(all_mask_features, amf_ref, atol=1e-2, rtol=1e-2)
    assert jnp.allclose(pred_masks, masks_ref, atol=1e-2, rtol=1e-2)

    print("KERNEL_OK")
</pallas_src>

<mosaic_0001>
module attributes {stable_mosaic.version = 11 : i64} {
  func.func @fused_heads_kernel(%arg0: i32, %arg1: i32, %arg2: memref<1x8x32xf32, #tpu.memory_space<vmem>>, %arg3: memref<1x64x128xf32, #tpu.memory_space<vmem>>, %arg4: memref<32x64xf32, #tpu.memory_space<vmem>>, %arg5: memref<32x1xf32, #tpu.memory_space<vmem>>, %arg6: memref<1x32xf32, #tpu.memory_space<vmem>>, %arg7: memref<1x32xf32, #tpu.memory_space<vmem>>, %arg8: memref<32x32xf32, #tpu.memory_space<vmem>>, %arg9: memref<1x32xf32, #tpu.memory_space<vmem>>, %arg10: memref<32x32xf32, #tpu.memory_space<vmem>>, %arg11: memref<1x32xf32, #tpu.memory_space<vmem>>, %arg12: memref<32x32xf32, #tpu.memory_space<vmem>>, %arg13: memref<1x32xf32, #tpu.memory_space<vmem>>, %arg14: memref<32x32xf32, #tpu.memory_space<vmem>>, %arg15: memref<1x32xf32, #tpu.memory_space<vmem>>, %arg16: memref<1x32x128xf32, #tpu.memory_space<vmem>>, %arg17: memref<1x8x2x128xf32, #tpu.memory_space<vmem>>, %arg18: memref<16x32xf32, #tpu.memory_space<vmem>>) attributes {dimension_semantics = [#tpu.dimension_semantics<parallel>, #tpu.dimension_semantics<arbitrary>], iteration_bounds = array<i64: 2, 2>, scalar_prefetch = 0 : i64, scratch_operands = 1 : i64, tpu.core_type = #tpu.core_type<tc>, window_params = [{transform_indices = @transform_0, window_bounds = array<i64: 1, 8, 32>}, {transform_indices = @transform_1, window_bounds = array<i64: 1, 64, 128>}, {pipeline_mode = #tpu.pipeline_mode<synchronous>, transform_indices = @transform_2, window_bounds = array<i64: 32, 64>}, {pipeline_mode = #tpu.pipeline_mode<synchronous>, transform_indices = @transform_3, window_bounds = array<i64: 32, 1>}, {pipeline_mode = #tpu.pipeline_mode<synchronous>, transform_indices = @transform_4, window_bounds = array<i64: 1, 32>}, {pipeline_mode = #tpu.pipeline_mode<synchronous>, transform_indices = @transform_5, window_bounds = array<i64: 1, 32>}, {pipeline_mode = #tpu.pipeline_mode<synchronous>, transform_indices = @transform_6, window_bounds = array<i64: 32, 32>}, {pipeline_mode = #tpu.pipeline_mode<synchronous>, transform_indices = @transform_7, window_bounds = array<i64: 1, 32>}, {pipeline_mode = #tpu.pipeline_mode<synchronous>, transform_indices = @transform_8, window_bounds = array<i64: 32, 32>}, {pipeline_mode = #tpu.pipeline_mode<synchronous>, transform_indices = @transform_9, window_bounds = array<i64: 1, 32>}, {pipeline_mode = #tpu.pipeline_mode<synchronous>, transform_indices = @transform_10, window_bounds = array<i64: 32, 32>}, {pipeline_mode = #tpu.pipeline_mode<synchronous>, transform_indices = @transform_11, window_bounds = array<i64: 1, 32>}, {pipeline_mode = #tpu.pipeline_mode<synchronous>, transform_indices = @transform_12, window_bounds = array<i64: 32, 32>}, {pipeline_mode = #tpu.pipeline_mode<synchronous>, transform_indices = @transform_13, window_bounds = array<i64: 1, 32>}, {transform_indices = @transform_14, window_bounds = array<i64: 1, 32, 128>}, {transform_indices = @transform_15, window_bounds = array<i64: 1, 8, 2, 128>}]} {
    %c0_i32 = arith.constant 0 : i32
    %0 = arith.cmpi eq, %arg1, %c0_i32 : i32
    %1 = arith.extui %0 : i1 to i32
    %c0_i32_0 = arith.constant 0 : i32
    %2 = arith.cmpi ne, %1, %c0_i32_0 : i32
    scf.if %2 {
      %c0_20 = arith.constant 0 : index
      %c0_21 = arith.constant 0 : index
      %c0_22 = arith.constant 0 : index
      %23 = vector.load %arg2[%c0_20, %c0_21, %c0_22] : memref<1x8x32xf32, #tpu.memory_space<vmem>>, vector<1x8x32xf32>
      %24 = vector.shape_cast %23 : vector<1x8x32xf32> to vector<8x32xf32>
      %cst_23 = arith.constant dense<0.000000e+00> : vector<8xf32>
      %25 = vector.multi_reduction <add>, %24, %cst_23 [1] : vector<8x32xf32> to vector<8xf32>
      %26 = vector.shape_cast %25 : vector<8xf32> to vector<8x1xf32>
      %cst_24 = arith.constant 3.200000e+01 : f32
      %27 = vector.broadcast %cst_24 : f32 to vector<8x1xf32>
      %28 = arith.divf %26, %27 : vector<8x1xf32>
      %29 = vector.broadcast %28 : vector<8x1xf32> to vector<8x32xf32>
      %30 = arith.subf %24, %29 : vector<8x32xf32>
      %31 = arith.mulf %30, %30 : vector<8x32xf32>
      %cst_25 = arith.constant dense<0.000000e+00> : vector<8xf32>
      %32 = vector.multi_reduction <add>, %31, %cst_25 [1] : vector<8x32xf32> to vector<8xf32>
      %33 = vector.shape_cast %32 : vector<8xf32> to vector<8x1xf32>
      %cst_26 = arith.constant 3.200000e+01 : f32
      %34 = vector.broadcast %cst_26 : f32 to vector<8x1xf32>
      %35 = arith.divf %33, %34 : vector<8x1xf32>
      %36 = vector.broadcast %28 : vector<8x1xf32> to vector<8x32xf32>
      %37 = arith.subf %24, %36 : vector<8x32xf32>
      %cst_27 = arith.constant 9.99999974E-6 : f32
      %38 = vector.broadcast %cst_27 : f32 to vector<8x1xf32>
      %39 = arith.addf %35, %38 : vector<8x1xf32>
      %40 = math.rsqrt %39 : vector<8x1xf32>
      %41 = vector.broadcast %40 : vector<8x1xf32> to vector<8x32xf32>
      %42 = arith.mulf %37, %41 : vector<8x32xf32>
      %c0_28 = arith.constant 0 : index
      %c0_29 = arith.constant 0 : index
      %43 = vector.load %arg6[%c0_28, %c0_29] : memref<1x32xf32, #tpu.memory_space<vmem>>, vector<1x32xf32>
      %44 = vector.broadcast %43 : vector<1x32xf32> to vector<8x32xf32>
      %45 = arith.mulf %42, %44 : vector<8x32xf32>
      %c0_30 = arith.constant 0 : index
      %c0_31 = arith.constant 0 : index
      %46 = vector.load %arg7[%c0_30, %c0_31] : memref<1x32xf32, #tpu.memory_space<vmem>>, vector<1x32xf32>
      %47 = vector.broadcast %46 : vector<1x32xf32> to vector<8x32xf32>
      %48 = arith.addf %45, %47 : vector<8x32xf32>
      %c0_32 = arith.constant 0 : index
      %c0_33 = arith.constant 0 : index
      %49 = vector.load %arg8[%c0_32, %c0_33] : memref<32x32xf32, #tpu.memory_space<vmem>>, vector<32x32xf32>
      %cst_34 = arith.constant dense<0.000000e+00> : vector<8x32xf32>
      %50 = tpu.matmul %48, %49, %cst_34 {dimension_numbers = #tpu.dot_dimension_numbers<[1], [0], [0], [1], [0, 0, 1, 1], [], []>} : vector<8x32xf32>, vector<32x32xf32>, vector<8x32xf32> -> vector<8x32xf32>
      %c0_35 = arith.constant 0 : index
      %c0_36 = arith.constant 0 : index
      %51 = vector.load %arg9[%c0_35, %c0_36] : memref<1x32xf32, #tpu.memory_space<vmem>>, vector<1x32xf32>
      %52 = vector.broadcast %51 : vector<1x32xf32> to vector<8x32xf32>
      %53 = arith.addf %50, %52 : vector<8x32xf32>
      %cst_37 = arith.constant 0.000000e+00 : f32
      %54 = vector.broadcast %cst_37 : f32 to vector<8x32xf32>
      %55 = arith.maximumf %53, %54 : vector<8x32xf32>
      %c0_38 = arith.constant 0 : index
      %c0_39 = arith.constant 0 : index
      %56 = vector.load %arg10[%c0_38, %c0_39] : memref<32x32xf32, #tpu.memory_space<vmem>>, vector<32x32xf32>
      %cst_40 = arith.constant dense<0.000000e+00> : vector<8x32xf32>
      %57 = tpu.matmul %55, %56, %cst_40 {dimension_numbers = #tpu.dot_dimension_numbers<[1], [0], [0], [1], [0, 0, 1, 1], [], []>} : vector<8x32xf32>, vector<32x32xf32>, vector<8x32xf32> -> vector<8x32xf32>
      %c0_41 = arith.constant 0 : index
      %c0_42 = arith.constant 0 : index
      %58 = vector.load %arg11[%c0_41, %c0_42] : memref<1x32xf32, #tpu.memory_space<vmem>>, vector<1x32xf32>
      %59 = vector.broadcast %58 : vector<1x32xf32> to vector<8x32xf32>
      %60 = arith.addf %57, %59 : vector<8x32xf32>
      %cst_43 = arith.constant 0.000000e+00 : f32
      %61 = vector.broadcast %cst_43 : f32 to vector<8x32xf32>
      %62 = arith.maximumf %60, %61 : vector<8x32xf32>
      %c0_44 = arith.constant 0 : index
      %c0_45 = arith.constant 0 : index
      %63 = vector.load %arg12[%c0_44, %c0_45] : memref<32x32xf32, #tpu.memory_space<vmem>>, vector<32x32xf32>
      %cst_46 = arith.constant dense<0.000000e+00> : vector<8x32xf32>
      %64 = tpu.matmul %62, %63, %cst_46 {dimension_numbers = #tpu.dot_dimension_numbers<[1], [0], [0], [1], [0, 0, 1, 1], [], []>} : vector<8x32xf32>, vector<32x32xf32>, vector<8x32xf32> -> vector<8x32xf32>
      %c0_47 = arith.constant 0 : index
      %c0_48 = arith.constant 0 : index
      %65 = vector.load %arg13[%c0_47, %c0_48] : memref<1x32xf32, #tpu.memory_space<vmem>>, vector<1x32xf32>
      %66 = vector.broadcast %65 : vector<1x32xf32> to vector<8x32xf32>
      %67 = arith.addf %64, %66 : vector<8x32xf32>
      %c0_49 = arith.constant 0 : index
      %c0_50 = arith.constant 0 : index
      %68 = vector.load %arg14[%c0_49, %c0_50] : memref<32x32xf32, #tpu.memory_space<vmem>>, vector<32x32xf32>
      %cst_51 = arith.constant dense<0.000000e+00> : vector<8x32xf32>
      %69 = tpu.matmul %62, %68, %cst_51 {dimension_numbers = #tpu.dot_dimension_numbers<[1], [0], [0], [1], [0, 0, 1, 1], [], []>} : vector<8x32xf32>, vector<32x32xf32>, vector<8x32xf32> -> vector<8x32xf32>
      %c0_52 = arith.constant 0 : index
      %c0_53 = arith.constant 0 : index
      %70 = vector.load %arg15[%c0_52, %c0_53] : memref<1x32xf32, #tpu.memory_space<vmem>>, vector<1x32xf32>
      %71 = vector.broadcast %70 : vector<1x32xf32> to vector<8x32xf32>
      %72 = arith.addf %69, %71 : vector<8x32xf32>
      %c0_54 = arith.constant 0 : index
      %c0_55 = arith.constant 0 : index
      %73 = vector.load %arg18[%c0_54, %c0_55] : memref<16x32xf32, #tpu.memory_space<vmem>>, vector<8x32xf32>
      tpu.vector_store %arg18[%c0_54, %c0_55], %67 {strides = array<i32>} : memref<16x32xf32, #tpu.memory_space<vmem>>, vector<8x32xf32>,
      %c8 = arith.constant 8 : index
      %c0_56 = arith.constant 0 : index
      %74 = vector.load %arg18[%c8, %c0_56] : memref<16x32xf32, #tpu.memory_space<vmem>>, vector<8x32xf32>
      tpu.vector_store %arg18[%c8, %c0_56], %72 {strides = array<i32>} : memref<16x32xf32, #tpu.memory_space<vmem>>, vector<8x32xf32>,
    } else {
    }
    %c0 = arith.constant 0 : index
    %c0_1 = arith.constant 0 : index
    %3 = vector.load %arg4[%c0, %c0_1] : memref<32x64xf32, #tpu.memory_space<vmem>>, vector<32x64xf32>
    %c0_2 = arith.constant 0 : index
    %c0_3 = arith.constant 0 : index
    %c0_4 = arith.constant 0 : index
    %4 = vector.load %arg3[%c0_2, %c0_3, %c0_4] : memref<1x64x128xf32, #tpu.memory_space<vmem>>, vector<1x64x128xf32>
    %5 = vector.shape_cast %4 : vector<1x64x128xf32> to vector<64x128xf32>
    %cst = arith.constant dense<0.000000e+00> : vector<32x128xf32>
    %6 = tpu.matmul %3, %5, %cst {dimension_numbers = #tpu.dot_dimension_numbers<[1], [0], [0], [1], [0, 0, 1, 1], [], []>} : vector<32x64xf32>, vector<64x128xf32>, vector<32x128xf32> -> vector<32x128xf32>
    %c0_5 = arith.constant 0 : index
    %c0_6 = arith.constant 0 : index
    %7 = vector.load %arg5[%c0_5, %c0_6] : memref<32x1xf32, #tpu.memory_space<vmem>>, vector<32x1xf32>
    %8 = vector.broadcast %7 : vector<32x1xf32> to vector<32x128xf32>
    %9 = arith.addf %6, %8 : vector<32x128xf32>
    %c0_7 = arith.constant 0 : index
    %c0_8 = arith.constant 0 : index
    %c0_9 = arith.constant 0 : index
    %10 = vector.load %arg16[%c0_7, %c0_8, %c0_9] : memref<1x32x128xf32, #tpu.memory_space<vmem>>, vector<1x32x128xf32>
    %11 = vector.shape_cast %10 : vector<1x32x128xf32> to vector<32x128xf32>
    %12 = vector.shape_cast %9 : vector<32x128xf32> to vector<1x32x128xf32>
    tpu.vector_store %arg16[%c0_7, %c0_8, %c0_9], %12 {strides = array<i32>} : memref<1x32x128xf32, #tpu.memory_space<vmem>>, vector<1x32x128xf32>,
    %c0_10 = arith.constant 0 : index
    %c0_11 = arith.constant 0 : index
    %13 = vector.load %arg18[%c0_10, %c0_11] : memref<16x32xf32, #tpu.memory_space<vmem>>, vector<16x32xf32>
    %cst_12 = arith.constant dense<0.000000e+00> : vector<16x128xf32>
    %14 = tpu.matmul %13, %9, %cst_12 {dimension_numbers = #tpu.dot_dimension_numbers<[1], [0], [0], [1], [0, 0, 1, 1], [], []>} : vector<16x32xf32>, vector<32x128xf32>, vector<16x128xf32> -> vector<16x128xf32>
    %15 = vector.extract_strided_slice %14 {offsets = [0, 0], sizes = [8, 128], strides = [1, 1]} : vector<16x128xf32> to vector<8x128xf32>
    %c0_13 = arith.constant 0 : index
    %c0_14 = arith.constant 0 : index
    %c0_15 = arith.constant 0 : index
    %c0_16 = arith.constant 0 : index
    %16 = vector.load %arg17[%c0_13, %c0_14, %c0_15, %c0_16] : memref<1x8x2x128xf32, #tpu.memory_space<vmem>>, vector<1x8x1x128xf32>
    %17 = vector.shape_cast %16 : vector<1x8x1x128xf32> to vector<8x128xf32>
    %18 = vector.shape_cast %15 : vector<8x128xf32> to vector<1x8x1x128xf32>
    tpu.vector_store %arg17[%c0_13, %c0_14, %c0_15, %c0_16], %18 {strides = array<i32>} : memref<1x8x2x128xf32, #tpu.memory_space<vmem>>, vector<1x8x1x128xf32>,
    %19 = vector.extract_strided_slice %14 {offsets = [8, 0], sizes = [8, 128], strides = [1, 1]} : vector<16x128xf32> to vector<8x128xf32>
    %c0_17 = arith.constant 0 : index
    %c0_18 = arith.constant 0 : index
    %c1 = arith.constant 1 : index
    %c0_19 = arith.constant 0 : index
    %20 = vector.load %arg17[%c0_17, %c0_18, %c1, %c0_19] : memref<1x8x2x128xf32, #tpu.memory_space<vmem>>, vector<1x8x1x128xf32>
    %21 = vector.shape_cast %20 : vector<1x8x1x128xf32> to vector<8x128xf32>
    %22 = vector.shape_cast %19 : vector<8x128xf32> to vector<1x8x1x128xf32>
    tpu.vector_store %arg17[%c0_17, %c0_18, %c1, %c0_19], %22 {strides = array<i32>} : memref<1x8x2x128xf32, #tpu.memory_space<vmem>>, vector<1x8x1x128xf32>,
    return
  }
  func.func @transform_0(%arg0: i32, %arg1: i32) -> (i32, i32, i32) {
    %c0_i32 = arith.constant 0 : i32
    %c0_i32_0 = arith.constant 0 : i32
    %c0_i32_1 = arith.constant 0 : i32
    return %arg0, %c0_i32, %c0_i32_0 : i32, i32, i32
  }
  func.func @transform_1(%arg0: i32, %arg1: i32) -> (i32, i32, i32) {
    %c0_i32 = arith.constant 0 : i32
    %c0_i32_0 = arith.constant 0 : i32
    return %arg0, %c0_i32, %arg1 : i32, i32, i32
  }
  func.func @transform_2(%arg0: i32, %arg1: i32) -> (i32, i32) {
    %c0_i32 = arith.constant 0 : i32
    %c0_i32_0 = arith.constant 0 : i32
    %c0_i32_1 = arith.constant 0 : i32
    return %c0_i32, %c0_i32_0 : i32, i32
  }
  func.func @transform_3(%arg0: i32, %arg1: i32) -> (i32, i32) {
    %c0_i32 = arith.constant 0 : i32
    %c0_i32_0 = arith.constant 0 : i32
    %c0_i32_1 = arith.constant 0 : i32
    return %c0_i32, %c0_i32_0 : i32, i32
  }
  func.func @transform_4(%arg0: i32, %arg1: i32) -> (i32, i32) {
    %c0_i32 = arith.constant 0 : i32
    %c0_i32_0 = arith.constant 0 : i32
    %c0_i32_1 = arith.constant 0 : i32
    return %c0_i32, %c0_i32_0 : i32, i32
  }
  func.func @transform_5(%arg0: i32, %arg1: i32) -> (i32, i32) {
    %c0_i32 = arith.constant 0 : i32
    %c0_i32_0 = arith.constant 0 : i32
    %c0_i32_1 = arith.constant 0 : i32
    return %c0_i32, %c0_i32_0 : i32, i32
  }
  func.func @transform_6(%arg0: i32, %arg1: i32) -> (i32, i32) {
    %c0_i32 = arith.constant 0 : i32
    %c0_i32_0 = arith.constant 0 : i32
    %c0_i32_1 = arith.constant 0 : i32
    return %c0_i32, %c0_i32_0 : i32, i32
  }
  func.func @transform_7(%arg0: i32, %arg1: i32) -> (i32, i32) {
    %c0_i32 = arith.constant 0 : i32
    %c0_i32_0 = arith.constant 0 : i32
    %c0_i32_1 = arith.constant 0 : i32
    return %c0_i32, %c0_i32_0 : i32, i32
  }
  func.func @transform_8(%arg0: i32, %arg1: i32) -> (i32, i32) {
    %c0_i32 = arith.constant 0 : i32
    %c0_i32_0 = arith.constant 0 : i32
    %c0_i32_1 = arith.constant 0 : i32
    return %c0_i32, %c0_i32_0 : i32, i32
  }
  func.func @transform_9(%arg0: i32, %arg1: i32) -> (i32, i32) {
    %c0_i32 = arith.constant 0 : i32
    %c0_i32_0 = arith.constant 0 : i32
    %c0_i32_1 = arith.constant 0 : i32
    return %c0_i32, %c0_i32_0 : i32, i32
  }
  func.func @transform_10(%arg0: i32, %arg1: i32) -> (i32, i32) {
    %c0_i32 = arith.constant 0 : i32
    %c0_i32_0 = arith.constant 0 : i32
    %c0_i32_1 = arith.constant 0 : i32
    return %c0_i32, %c0_i32_0 : i32, i32
  }
  func.func @transform_11(%arg0: i32, %arg1: i32) -> (i32, i32) {
    %c0_i32 = arith.constant 0 : i32
    %c0_i32_0 = arith.constant 0 : i32
    %c0_i32_1 = arith.constant 0 : i32
    return %c0_i32, %c0_i32_0 : i32, i32
  }
  func.func @transform_12(%arg0: i32, %arg1: i32) -> (i32, i32) {
    %c0_i32 = arith.constant 0 : i32
    %c0_i32_0 = arith.constant 0 : i32
    %c0_i32_1 = arith.constant 0 : i32
    return %c0_i32, %c0_i32_0 : i32, i32
  }
  func.func @transform_13(%arg0: i32, %arg1: i32) -> (i32, i32) {
    %c0_i32 = arith.constant 0 : i32
    %c0_i32_0 = arith.constant 0 : i32
    %c0_i32_1 = arith.constant 0 : i32
    return %c0_i32, %c0_i32_0 : i32, i32
  }
  func.func @transform_14(%arg0: i32, %arg1: i32) -> (i32, i32, i32) {
    %c0_i32 = arith.constant 0 : i32
    %c0_i32_0 = arith.constant 0 : i32
    return %arg0, %c0_i32, %arg1 : i32, i32, i32
  }
  func.func @transform_15(%arg0: i32, %arg1: i32) -> (i32, i32, i32, i32) {
    %c0_i32 = arith.constant 0 : i32
    %c0_i32_0 = arith.constant 0 : i32
    %c0_i32_1 = arith.constant 0 : i32
    return %arg0, %c0_i32, %c0_i32_0, %arg1 : i32, i32, i32, i32
  }
}

</mosaic_0001>

<llo_original>
// kernel: tpu_custom_call.1
$region0: #{tpu_custom_call.1}
  #allocation0 [shape = 'u32[]', space=smem, size = 0x4, offset = 0x4, fixed_abs, tag = 'smem constant byte address 0x4 - core index']
  #allocation1 [shape = 'u32[144,128]{1,0:T(1,128)}', space=vmem, size = 0x12000, scoped, tag = 'internal scratch']
  #allocation2 [shape = 'f32[16,32]{1,0:T(8,128)}', space=vmem, size = 0x2000, scoped, tag = 'scratch operand']
  %s0 = inlined_call_operand.hbm [shape: f32[2,8,32], index: 0, kind: input, shape index: {}]
  %s1 = inlined_call_operand.hbm [shape: f32[2,64,256], index: 1, kind: input, shape index: {}]
  %s2 = inlined_call_operand.vmem [shape: f32[32,64], index: 2, kind: input, shape index: {}]
  %s3 = inlined_call_operand.vmem [shape: f32[32,1], index: 3, kind: input, shape index: {}]
  %s4 = inlined_call_operand.vmem [shape: f32[1,32], index: 4, kind: input, shape index: {}]
  %s5 = inlined_call_operand.vmem [shape: f32[1,32], index: 5, kind: input, shape index: {}]
  %s6 = inlined_call_operand.hbm [shape: f32[32,32], index: 6, kind: input, shape index: {}]
  %s7 = inlined_call_operand.vmem [shape: f32[1,32], index: 7, kind: input, shape index: {}]
  %s8 = inlined_call_operand.hbm [shape: f32[32,32], index: 8, kind: input, shape index: {}]
  %s9 = inlined_call_operand.hbm [shape: f32[1,32], index: 9, kind: input, shape index: {}]
  %s10 = inlined_call_operand.vmem [shape: f32[32,32], index: 10, kind: input, shape index: {}]
  %s11 = inlined_call_operand.vmem [shape: f32[1,32], index: 11, kind: input, shape index: {}]
  %s12 = inlined_call_operand.hbm [shape: f32[32,32], index: 12, kind: input, shape index: {}]
  %s13 = inlined_call_operand.vmem [shape: f32[1,32], index: 13, kind: input, shape index: {}]
  %s14 = inlined_call_operand.hbm [shape: f32[2,32,256], index: 14, kind: output, shape index: {0}]
  %s15 = inlined_call_operand.hbm [shape: f32[2,8,2,256], index: 15, kind: output, shape index: {1}]
  %16 = xla_tuple %s14, %s15
  %s17 = sld [smem:[#allocation0]]
  $region125: #{tpu_custom_call.1} parent=0
    _
  %s19 = ssub.s32 1, %s17
  %s20 = scalar_select 0, %s19, %s17
  $region1: #{tpu_custom_call.1} parent=0
    #allocation3 [shape = 'u8[8192]{0}', space=vmem, size = 0x2000, scoped, tag = 'input window, operand 0']
    #allocation4 [shape = 's32[2]{0}', space=sflag, size = 0x8, scoped, tag = 'scoped memory for tpu_custom_call.1']
    #allocation5 [shape = 's32[2]{0}', space=sflag, size = 0x8, scoped, tag = 'scoped memory for tpu_custom_call.1']
    #allocation6 [shape = 'u8[65536]{0}', space=vmem, size = 0x10000, scoped, tag = 'input window, operand 1']
    #allocation7 [shape = 's32[2]{0}', space=sflag, size = 0x8, scoped, tag = 'scoped memory for tpu_custom_call.1']
    #allocation8 [shape = 'u8[16384]{0}', space=vmem, size = 0x4000, scoped, tag = 'input window, operand 6, single buffered']
    #allocation9 [shape = 'u8[16384]{0}', space=vmem, size = 0x4000, scoped, tag = 'input window, operand 8, single buffered']
    #allocation10 [shape = 's32[1]{0}', space=sflag, size = 0x4, scoped, tag = 'scoped memory for tpu_custom_call.1']
    #allocation11 [shape = 'u8[512]{0}', space=vmem, size = 0x400, scoped, tag = 'input window, operand 9, single buffered']
    #allocation12 [shape = 'u8[16384]{0}', space=vmem, size = 0x4000, scoped, tag = 'input window, operand 12, single buffered']
    #allocation13 [shape = 's32[1]{0}', space=sflag, size = 0x4, scoped, tag = 'scoped memory for tpu_custom_call.1']
    #allocation14 [shape = 'u8[32768]{0}', space=vmem, size = 0x8000, scoped, tag = 'output window, operand 0']
    #allocation15 [shape = 'u8[16384]{0}', space=vmem, size = 0x4000, scoped, tag = 'output window, operand 1']
    #allocation16 [shape = 's32[2]{0}', space=sflag, size = 0x8, scoped, tag = 'scoped memory for tpu_custom_call.1']
    %21 = vsyncpa [#allocation4], 0
    %s22 = scalar_lea.sflag [#allocation4], 1
    %23 = vsyncpa %s22, 0
    %24 = vsyncpa [#allocation7], 0
    %s25 = scalar_lea.sflag [#allocation7], 1
    %26 = vsyncpa %s25, 0
    %27 = vsyncpa [#allocation10], 0
    %28 = vsyncpa [#allocation13], 0
    %29 = vsyncpa [#allocation5], 0
    %s30 = scalar_lea.sflag [#allocation5], 1
    %31 = vsyncpa %s30, 0
    %32 = vsyncpa [#allocation16], 0
    %s33 = scalar_lea.sflag [#allocation16], 1
    %34 = vsyncpa %s33, 0
    loop: start=0, step=1, limit=6
    $region2: #{tpu_custom_call.1} parent=1 // loop_pre_header
      _
    $region3: #{tpu_custom_call.1} parent=1 // loop_header
      %s36 = sphi 0, %s40
      %p37 = scmp.ge.s32.totalorder %s36, 6
      %s43 = sphi 0, %s55
      %s44 = sphi 0, %s51
      %s45 = sphi 0, %s43
      %s46 = sphi 0, %s44
      %s47 = sphi 0, %s45
      %s48 = sphi 0, %s46
      %s58 = sphi 0, %s60
      %s61 = sphi 0, %s58
      %s62 = sphi 0, %s61
      %s78 = sphi 0, %s62
      %s86 = sphi 0, %s88
      %s89 = sphi 0, %s86
      %s90 = sphi 0, %s89
      %s106 = sphi 0, %s90
      %s110 = sphi 0, %s110
      %s112 = sphi 0, %s110
      %s113 = sphi 0, %s112
      %s127 = sphi 0, %s113
      %s131 = sphi 0, %s131
      %s133 = sphi 0, %s131
      %s134 = sphi 0, %s133
      %s148 = sphi 0, %s134
      %s152 = sphi 0, %s152
      %s154 = sphi 0, %s152
      %s155 = sphi 0, %s154
      %s169 = sphi 0, %s155
      %s173 = sphi 0, %s173
      %s175 = sphi 0, %s173
      %s176 = sphi 0, %s175
      %s190 = sphi 0, %s176
      %s194 = sphi 0, %s194
      %s196 = sphi 0, %s194
      %s197 = sphi 0, %s196
      %s211 = sphi 0, %s197
      %s215 = sphi 0, %s215
      %s217 = sphi 0, %s215
      %s218 = sphi 0, %s217
      %s232 = sphi 0, %s218
      %s236 = sphi 0, %s236
      %s238 = sphi 0, %s236
      %s239 = sphi 0, %s238
      %s253 = sphi 0, %s239
      %s257 = sphi 0, %s257
      %s259 = sphi 0, %s257
      %s260 = sphi 0, %s259
      %s274 = sphi 0, %s260
      %s278 = sphi 0, %s278
      %s280 = sphi 0, %s278
      %s281 = sphi 0, %s280
      %s295 = sphi 0, %s281
      %s299 = sphi 0, %s299
      %s301 = sphi 0, %s299
      %s302 = sphi 0, %s301
      %s316 = sphi 0, %s302
      %s320 = sphi 0, %s320
      %s322 = sphi 0, %s320
      %s323 = sphi 0, %s322
      %s337 = sphi 0, %s323
      %s341 = sphi 0, %s341
      %s343 = sphi 0, %s341
      %s344 = sphi 0, %s343
      %s358 = sphi 0, %s344
      %s366 = sphi 0, %s368
      %s369 = sphi 0, %s366
      %s370 = sphi 0, %s369
      %s386 = sphi 0, %s370
      %s394 = sphi 0, %s396
      %s397 = sphi 0, %s394
      %s398 = sphi 0, %s397
      %s414 = sphi 0, %s398
    $region4: #{tpu_custom_call.1} parent=1 // loop_header_branch
      %39 = sbr.rel (%p37) target = $region8
    $region5: #{tpu_custom_call.1} parent=1 // loop_body
      %s41 = ssub.s32 %s36, 1
      %s42 = ssub.s32 %s36, 2
      %s49 = sadd.s32 1, %s44
      %p50 = scmp.ge.s32.totalorder %s49, 2
      %s51 = scalar_select %p50, 0, %s49
      %s52 = sadd.s32 1, %s43
      %s53 = scalar_select %p50, %s52, %s43
      %p54 = scmp.ge.s32.totalorder %s53, 2
      %s55 = scalar_select %p54, 0, %s53
      %s56 = ssub.s32 %s43, %s55
      %p57 = scmp.eq.s32.totalorder %s56, 0
      %s59 = sadd.s32 %s58, 1
      %s60 = scalar_select %p57, %s58, %s59
      %p63 = pneg %p57
      %p64 = scmp.eq.s32.totalorder %s36, 3
      %p65 = por %p63, %p64
      %p66 = scmp.ne.s32.totalorder %s58, %s61
      %p67 = scmp.eq.s32.totalorder %s36, 0
      %p68 = por %p66, %p67
      %p69 = scmp.ne.s32.totalorder %s58, %s61
      %p70 = scmp.eq.s32.totalorder %s41, 3
      %p71 = por %p69, %p70
      %p72 = scmp.ne.s32.totalorder %s61, %s62
      %p73 = scmp.eq.s32.totalorder %s41, 0
      %p74 = por %p72, %p73
      %p75 = scmp.ne.s32.totalorder %s61, %s62
      %p76 = scmp.eq.s32.totalorder %s42, 3
      %p77 = por %p75, %p76
      %p79 = scmp.ne.s32.totalorder %s62, %s78
      %p80 = scmp.eq.s32.totalorder %s42, 0
      %p81 = por %p79, %p80
      %s82 = ssub.s32 %s43, %s55
      %s83 = ssub.s32 %s44, %s51
      %s84 = sor.u32 %s82, %s83
      %p85 = scmp.eq.s32.totalorder %s84, 0
      %s87 = sadd.s32 %s86, 1
      %s88 = scalar_select %p85, %s86, %s87
      %p91 = pneg %p85
      %p92 = scmp.eq.s32.totalorder %s36, 3
      %p93 = por %p91, %p92
      %p94 = scmp.ne.s32.totalorder %s86, %s89
      %p95 = scmp.eq.s32.totalorder %s36, 0
      %p96 = por %p94, %p95
      %p97 = scmp.ne.s32.totalorder %s86, %s89
      %p98 = scmp.eq.s32.totalorder %s41, 3
      %p99 = por %p97, %p98
      %p100 = scmp.ne.s32.totalorder %s89, %s90
      %p101 = scmp.eq.s32.totalorder %s41, 0
      %p102 = por %p100, %p101
      %p103 = scmp.ne.s32.totalorder %s89, %s90
      %p104 = scmp.eq.s32.totalorder %s42, 3
      %p105 = por %p103, %p104
      %p107 = scmp.ne.s32.totalorder %s90, %s106
      %p108 = scmp.eq.s32.totalorder %s42, 0
      %p109 = por %p107, %p108
      %s111 = sadd.s32 %s110, 1
      %p114 = scmp.eq.s32.totalorder %s36, 3
      %p115 = scmp.ne.s32.totalorder %s110, %s112
      %p116 = scmp.eq.s32.totalorder %s36, 0
      %p117 = por %p115, %p116
      %p118 = scmp.ne.s32.totalorder %s110, %s112
      %p119 = scmp.eq.s32.totalorder %s41, 3
      %p120 = por %p118, %p119
      %p121 = scmp.ne.s32.totalorder %s112, %s113
      %p122 = scmp.eq.s32.totalorder %s41, 0
      %p123 = por %p121, %p122
      %p124 = scmp.ne.s32.totalorder %s112, %s113
      %p125 = scmp.eq.s32.totalorder %s42, 3
      %p126 = por %p124, %p125
      %p128 = scmp.ne.s32.totalorder %s113, %s127
      %p129 = scmp.eq.s32.totalorder %s42, 0
      %p130 = por %p128, %p129
      %s132 = sadd.s32 %s131, 1
      %p135 = scmp.eq.s32.totalorder %s36, 3
      %p136 = scmp.ne.s32.totalorder %s131, %s133
      %p137 = scmp.eq.s32.totalorder %s36, 0
      %p138 = por %p136, %p137
      %p139 = scmp.ne.s32.totalorder %s131, %s133
      %p140 = scmp.eq.s32.totalorder %s41, 3
      %p141 = por %p139, %p140
      %p142 = scmp.ne.s32.totalorder %s133, %s134
      %p143 = scmp.eq.s32.totalorder %s41, 0
      %p144 = por %p142, %p143
      %p145 = scmp.ne.s32.totalorder %s133, %s134
      %p146 = scmp.eq.s32.totalorder %s42, 3
      %p147 = por %p145, %p146
      %p149 = scmp.ne.s32.totalorder %s134, %s148
      %p150 = scmp.eq.s32.totalorder %s42, 0
      %p151 = por %p149, %p150
      %s153 = sadd.s32 %s152, 1
      %p156 = scmp.eq.s32.totalorder %s36, 3
      %p157 = scmp.ne.s32.totalorder %s152, %s154
      %p158 = scmp.eq.s32.totalorder %s36, 0
      %p159 = por %p157, %p158
      %p160 = scmp.ne.s32.totalorder %s152, %s154
      %p161 = scmp.eq.s32.totalorder %s41, 3
      %p162 = por %p160, %p161
      %p163 = scmp.ne.s32.totalorder %s154, %s155
      %p164 = scmp.eq.s32.totalorder %s41, 0
      %p165 = por %p163, %p164
      %p166 = scmp.ne.s32.totalorder %s154, %s155
      %p167 = scmp.eq.s32.totalorder %s42, 3
      %p168 = por %p166, %p167
      %p170 = scmp.ne.s32.totalorder %s155, %s169
      %p171 = scmp.eq.s32.totalorder %s42, 0
      %p172 = por %p170, %p171
      %s174 = sadd.s32 %s173, 1
      %p177 = scmp.eq.s32.totalorder %s36, 3
      %p178 = scmp.ne.s32.totalorder %s173, %s175
      %p179 = scmp.eq.s32.totalorder %s36, 0
      %p180 = por %p178, %p179
      %p181 = scmp.ne.s32.totalorder %s173, %s175
      %p182 = scmp.eq.s32.totalorder %s41, 3
      %p183 = por %p181, %p182
      %p184 = scmp.ne.s32.totalorder %s175, %s176
      %p185 = scmp.eq.s32.totalorder %s41, 0
      %p186 = por %p184, %p185
      %p187 = scmp.ne.s32.totalorder %s175, %s176
      %p188 = scmp.eq.s32.totalorder %s42, 3
      %p189 = por %p187, %p188
      %p191 = scmp.ne.s32.totalorder %s176, %s190
      %p192 = scmp.eq.s32.totalorder %s42, 0
      %p193 = por %p191, %p192
      %s195 = sadd.s32 %s194, 1
      %p198 = scmp.eq.s32.totalorder %s36, 3
      %p199 = scmp.ne.s32.totalorder %s194, %s196
      %p200 = scmp.eq.s32.totalorder %s36, 0
      %p201 = por %p199, %p200
      %p202 = scmp.ne.s32.totalorder %s194, %s196
      %p203 = scmp.eq.s32.totalorder %s41, 3
      %p204 = por %p202, %p203
      %p205 = scmp.ne.s32.totalorder %s196, %s197
      %p206 = scmp.eq.s32.totalorder %s41, 0
      %p207 = por %p205, %p206
      %p208 = scmp.ne.s32.totalorder %s196, %s197
      %p209 = scmp.eq.s32.totalorder %s42, 3
      %p210 = por %p208, %p209
      %p212 = scmp.ne.s32.totalorder %s197, %s211
      %p213 = scmp.eq.s32.totalorder %s42, 0
      %p214 = por %p212, %p213
      %s216 = sadd.s32 %s215, 1
      %p219 = scmp.eq.s32.totalorder %s36, 3
      %p220 = scmp.ne.s32.totalorder %s215, %s217
      %p221 = scmp.eq.s32.totalorder %s36, 0
      %p222 = por %p220, %p221
      %p223 = scmp.ne.s32.totalorder %s215, %s217
      %p224 = scmp.eq.s32.totalorder %s41, 3
      %p225 = por %p223, %p224
      %p226 = scmp.ne.s32.totalorder %s217, %s218
      %p227 = scmp.eq.s32.totalorder %s41, 0
      %p228 = por %p226, %p227
      %p229 = scmp.ne.s32.totalorder %s217, %s218
      %p230 = scmp.eq.s32.totalorder %s42, 3
      %p231 = por %p229, %p230
      %p233 = scmp.ne.s32.totalorder %s218, %s232
      %p234 = scmp.eq.s32.totalorder %s42, 0
      %p235 = por %p233, %p234
      %s237 = sadd.s32 %s236, 1
      %p240 = scmp.eq.s32.totalorder %s36, 3
      %p241 = scmp.ne.s32.totalorder %s236, %s238
      %p242 = scmp.eq.s32.totalorder %s36, 0
      %p243 = por %p241, %p242
      %p244 = scmp.ne.s32.totalorder %s236, %s238
      %p245 = scmp.eq.s32.totalorder %s41, 3
      %p246 = por %p244, %p245
      %p247 = scmp.ne.s32.totalorder %s238, %s239
      %p248 = scmp.eq.s32.totalorder %s41, 0
      %p249 = por %p247, %p248
      %p250 = scmp.ne.s32.totalorder %s238, %s239
      %p251 = scmp.eq.s32.totalorder %s42, 3
      %p252 = por %p250, %p251
      %p254 = scmp.ne.s32.totalorder %s239, %s253
      %p255 = scmp.eq.s32.totalorder %s42, 0
      %p256 = por %p254, %p255
      %s258 = sadd.s32 %s257, 1
      %p261 = scmp.eq.s32.totalorder %s36, 3
      %p262 = scmp.ne.s32.totalorder %s257, %s259
      %p263 = scmp.eq.s32.totalorder %s36, 0
      %p264 = por %p262, %p263
      %p265 = scmp.ne.s32.totalorder %s257, %s259
      %p266 = scmp.eq.s32.totalorder %s41, 3
      %p267 = por %p265, %p266
      %p268 = scmp.ne.s32.totalorder %s259, %s260
      %p269 = scmp.eq.s32.totalorder %s41, 0
      %p270 = por %p268, %p269
      %p271 = scmp.ne.s32.totalorder %s259, %s260
      %p272 = scmp.eq.s32.totalorder %s42, 3
      %p273 = por %p271, %p272
      %p275 = scmp.ne.s32.totalorder %s260, %s274
      %p276 = scmp.eq.s32.totalorder %s42, 0
      %p277 = por %p275, %p276
      %s279 = sadd.s32 %s278, 1
      %p282 = scmp.eq.s32.totalorder %s36, 3
      %p283 = scmp.ne.s32.totalorder %s278, %s280
      %p284 = scmp.eq.s32.totalorder %s36, 0
      %p285 = por %p283, %p284
      %p286 = scmp.ne.s32.totalorder %s278, %s280
      %p287 = scmp.eq.s32.totalorder %s41, 3
      %p288 = por %p286, %p287
      %p289 = scmp.ne.s32.totalorder %s280, %s281
      %p290 = scmp.eq.s32.totalorder %s41, 0
      %p291 = por %p289, %p290
      %p292 = scmp.ne.s32.totalorder %s280, %s281
      %p293 = scmp.eq.s32.totalorder %s42, 3
      %p294 = por %p292, %p293
      %p296 = scmp.ne.s32.totalorder %s281, %s295
      %p297 = scmp.eq.s32.totalorder %s42, 0
      %p298 = por %p296, %p297
      %s300 = sadd.s32 %s299, 1
      %p303 = scmp.eq.s32.totalorder %s36, 3
      %p304 = scmp.ne.s32.totalorder %s299, %s301
      %p305 = scmp.eq.s32.totalorder %s36, 0
      %p306 = por %p304, %p305
      %p307 = scmp.ne.s32.totalorder %s299, %s301
      %p308 = scmp.eq.s32.totalorder %s41, 3
      %p309 = por %p307, %p308
      %p310 = scmp.ne.s32.totalorder %s301, %s302
      %p311 = scmp.eq.s32.totalorder %s41, 0
      %p312 = por %p310, %p311
      %p313 = scmp.ne.s32.totalorder %s301, %s302
      %p314 = scmp.eq.s32.totalorder %s42, 3
      %p315 = por %p313, %p314
      %p317 = scmp.ne.s32.totalorder %s302, %s316
      %p318 = scmp.eq.s32.totalorder %s42, 0
      %p319 = por %p317, %p318
      %s321 = sadd.s32 %s320, 1
      %p324 = scmp.eq.s32.totalorder %s36, 3
      %p325 = scmp.ne.s32.totalorder %s320, %s322
      %p326 = scmp.eq.s32.totalorder %s36, 0
      %p327 = por %p325, %p326
      %p328 = scmp.ne.s32.totalorder %s320, %s322
      %p329 = scmp.eq.s32.totalorder %s41, 3
      %p330 = por %p328, %p329
      %p331 = scmp.ne.s32.totalorder %s322, %s323
      %p332 = scmp.eq.s32.totalorder %s41, 0
      %p333 = por %p331, %p332
      %p334 = scmp.ne.s32.totalorder %s322, %s323
      %p335 = scmp.eq.s32.totalorder %s42, 3
      %p336 = por %p334, %p335
      %p338 = scmp.ne.s32.totalorder %s323, %s337
      %p339 = scmp.eq.s32.totalorder %s42, 0
      %p340 = por %p338, %p339
      %s342 = sadd.s32 %s341, 1
      %p345 = scmp.eq.s32.totalorder %s36, 3
      %p346 = scmp.ne.s32.totalorder %s341, %s343
      %p347 = scmp.eq.s32.totalorder %s36, 0
      %p348 = por %p346, %p347
      %p349 = scmp.ne.s32.totalorder %s341, %s343
      %p350 = scmp.eq.s32.totalorder %s41, 3
      %p351 = por %p349, %p350
      %p352 = scmp.ne.s32.totalorder %s343, %s344
      %p353 = scmp.eq.s32.totalorder %s41, 0
      %p354 = por %p352, %p353
      %p355 = scmp.ne.s32.totalorder %s343, %s344
      %p356 = scmp.eq.s32.totalorder %s42, 3
      %p357 = por %p355, %p356
      %p359 = scmp.ne.s32.totalorder %s344, %s358
      %p360 = scmp.eq.s32.totalorder %s42, 0
      %p361 = por %p359, %p360
      %s362 = ssub.s32 %s43, %s55
      %s363 = ssub.s32 %s44, %s51
      %s364 = sor.u32 %s362, %s363
      %p365 = scmp.eq.s32.totalorder %s364, 0
      %s367 = sadd.s32 %s366, 1
      %s368 = scalar_select %p365, %s366, %s367
      %p371 = pneg %p365
      %p372 = scmp.eq.s32.totalorder %s36, 3
      %p373 = por %p371, %p372
      %p374 = scmp.ne.s32.totalorder %s366, %s369
      %p375 = scmp.eq.s32.totalorder %s36, 0
      %p376 = por %p374, %p375
      %p377 = scmp.ne.s32.totalorder %s366, %s369
      %p378 = scmp.eq.s32.totalorder %s41, 3
      %p379 = por %p377, %p378
      %p380 = scmp.ne.s32.totalorder %s369, %s370
      %p381 = scmp.eq.s32.totalorder %s41, 0
      %p382 = por %p380, %p381
      %p383 = scmp.ne.s32.totalorder %s369, %s370
      %p384 = scmp.eq.s32.totalorder %s42, 3
      %p385 = por %p383, %p384
      %p387 = scmp.ne.s32.totalorder %s370, %s386
      %p388 = scmp.eq.s32.totalorder %s42, 0
      %p389 = por %p387, %p388
      %s390 = ssub.s32 %s43, %s55
      %s391 = ssub.s32 %s44, %s51
      %s392 = sor.u32 %s390, %s391
      %p393 = scmp.eq.s32.totalorder %s392, 0
      %s395 = sadd.s32 %s394, 1
      %s396 = scalar_select %p393, %s394, %s395
      %p399 = pneg %p393
      %p400 = scmp.eq.s32.totalorder %s36, 3
      %p401 = por %p399, %p400
      %p402 = scmp.ne.s32.totalorder %s394, %s397
      %p403 = scmp.eq.s32.totalorder %s36, 0
      %p404 = por %p402, %p403
      %p405 = scmp.ne.s32.totalorder %s394, %s397
      %p406 = scmp.eq.s32.totalorder %s41, 3
      %p407 = por %p405, %p406
      %p408 = scmp.ne.s32.totalorder %s397, %s398
      %p409 = scmp.eq.s32.totalorder %s41, 0
      %p410 = por %p408, %p409
      %p411 = scmp.ne.s32.totalorder %s397, %s398
      %p412 = scmp.eq.s32.totalorder %s42, 3
      %p413 = por %p411, %p412
      %p415 = scmp.ne.s32.totalorder %s398, %s414
      %p416 = scmp.eq.s32.totalorder %s42, 0
      %p417 = por %p415, %p416
      %p418 = scmp.le.s32.totalorder 1, %s36
      %p419 = scmp.lt.s32.totalorder %s36, 5
      %p420 = pnand %p418, %p419
      %p421 = pneg %p420
      // Predicated region
      $region9: #{tpu_custom_call.1} parent=5 // pred_check
        _
      $region10: #{tpu_custom_call.1} parent=5 // pred_check_branch
        %423 = sbr.rel (%p420) target = $region12
      $region11: #{tpu_custom_call.1} parent=5 // pred_region
        %s424 = ssub.s32 %s36, 1
        // Predicated region
        $region13: #{tpu_custom_call.1} parent=11 // pred_check
          %p425 = pneg %p123
        $region14: #{tpu_custom_call.1} parent=11 // pred_check_branch
          %427 = sbr.rel (%p425) target = $region16
        $region15: #{tpu_custom_call.1} parent=11 // pred_region
          _
        $region16: #{tpu_custom_call.1} parent=11 // pred_fallthru
          _
        // Predicated region
        $region17: #{tpu_custom_call.1} parent=11 // pred_check
          %p428 = pneg %p144
        $region18: #{tpu_custom_call.1} parent=11 // pred_check_branch
          %430 = sbr.rel (%p428) target = $region20
        $region19: #{tpu_custom_call.1} parent=11 // pred_region
          _
        $region20: #{tpu_custom_call.1} parent=11 // pred_fallthru
          _
        // Predicated region
        $region21: #{tpu_custom_call.1} parent=11 // pred_check
          %p431 = pneg %p165
        $region22: #{tpu_custom_call.1} parent=11 // pred_check_branch
          %433 = sbr.rel (%p431) target = $region24
        $region23: #{tpu_custom_call.1} parent=11 // pred_region
          _
        $region24: #{tpu_custom_call.1} parent=11 // pred_fallthru
          _
        // Predicated region
        $region25: #{tpu_custom_call.1} parent=11 // pred_check
          %p434 = pneg %p186
        $region26: #{tpu_custom_call.1} parent=11 // pred_check_branch
          %436 = sbr.rel (%p434) target = $region28
        $region27: #{tpu_custom_call.1} parent=11 // pred_region
          _
        $region28: #{tpu_custom_call.1} parent=11 // pred_fallthru
          _
        // Predicated region
        $region29: #{tpu_custom_call.1} parent=11 // pred_check
          %p437 = pneg %p207
        $region30: #{tpu_custom_call.1} parent=11 // pred_check_branch
          %439 = sbr.rel (%p437) target = $region32
        $region31: #{tpu_custom_call.1} parent=11 // pred_region
          %s441 = ssub.s32 512, 512
          %442 = vsyncadd [#allocation7], %s441
          %s443 = sshll.u32 [#allocation8], 4
          %s444 = int_to_ptr.vmem [resolvable:$true] %s443
          %449 = dma.hbm_to_vmem [thread:$0]  %s6, 512, %s444, [#allocation7], 128, 128, 8
        $region32: #{tpu_custom_call.1} parent=11 // pred_fallthru
          _
        // Predicated region
        $region33: #{tpu_custom_call.1} parent=11 // pred_check
          %p450 = pneg %p228
        $region34: #{tpu_custom_call.1} parent=11 // pred_check_branch
          %452 = sbr.rel (%p450) target = $region36
        $region35: #{tpu_custom_call.1} parent=11 // pred_region
          _
        $region36: #{tpu_custom_call.1} parent=11 // pred_fallthru
          _
        // Predicated region
        $region37: #{tpu_custom_call.1} parent=11 // pred_check
          %p453 = pneg %p249
        $region38: #{tpu_custom_call.1} parent=11 // pred_check_branch
          %455 = sbr.rel (%p453) target = $region40
        $region39: #{tpu_custom_call.1} parent=11 // pred_region
          %s457 = ssub.s32 512, 512
          %458 = vsyncadd [#allocation10], %s457
          %s459 = sshll.u32 [#allocation9], 4
          %s460 = int_to_ptr.vmem [resolvable:$true] %s459
          %465 = dma.hbm_to_vmem [thread:$0]  %s8, 512, %s460, [#allocation10], 128, 128, 8
        $region40: #{tpu_custom_call.1} parent=11 // pred_fallthru
          _
        // Predicated region
        $region41: #{tpu_custom_call.1} parent=11 // pred_check
          %p466 = pneg %p270
        $region42: #{tpu_custom_call.1} parent=11 // pred_check_branch
          %468 = sbr.rel (%p466) target = $region44
        $region43: #{tpu_custom_call.1} parent=11 // pred_region
          %s470 = ssub.s32 16, 16
          %471 = vsyncadd [#allocation10], %s470
          %s473 = sshll.u32 [#allocation11], 4
          %s474 = int_to_ptr.vmem [resolvable:$true] %s473
          %476 = dma.hbm_to_vmem [thread:$0]  %s9, 16, %s474, [#allocation10]
        $region44: #{tpu_custom_call.1} parent=11 // pred_fallthru
          _
        // Predicated region
        $region45: #{tpu_custom_call.1} parent=11 // pred_check
          %p477 = pneg %p291
        $region46: #{tpu_custom_call.1} parent=11 // pred_check_branch
          %479 = sbr.rel (%p477) target = $region48
        $region47: #{tpu_custom_call.1} parent=11 // pred_region
          _
        $region48: #{tpu_custom_call.1} parent=11 // pred_fallthru
          _
        // Predicated region
        $region49: #{tpu_custom_call.1} parent=11 // pred_check
          %p480 = pneg %p312
        $region50: #{tpu_custom_call.1} parent=11 // pred_check_branch
          %482 = sbr.rel (%p480) target = $region52
        $region51: #{tpu_custom_call.1} parent=11 // pred_region
          _
        $region52: #{tpu_custom_call.1} parent=11 // pred_fallthru
          _
        // Predicated region
        $region53: #{tpu_custom_call.1} parent=11 // pred_check
          %p483 = pneg %p333
        $region54: #{tpu_custom_call.1} parent=11 // pred_check_branch
          %485 = sbr.rel (%p483) target = $region56
        $region55: #{tpu_custom_call.1} parent=11 // pred_region
          %s487 = ssub.s32 512, 512
          %488 = vsyncadd [#allocation13], %s487
          %s489 = sshll.u32 [#allocation12], 4
          %s490 = int_to_ptr.vmem [resolvable:$true] %s489
          %495 = dma.hbm_to_vmem [thread:$0]  %s12, 512, %s490, [#allocation13], 128, 128, 8
        $region56: #{tpu_custom_call.1} parent=11 // pred_fallthru
          _
        // Predicated region
        $region57: #{tpu_custom_call.1} parent=11 // pred_check
          %p496 = pneg %p354
        $region58: #{tpu_custom_call.1} parent=11 // pred_check_branch
          %498 = sbr.rel (%p496) target = $region60
        $region59: #{tpu_custom_call.1} parent=11 // pred_region
          _
        $region60: #{tpu_custom_call.1} parent=11 // pred_fallthru
          _
      $region12: #{tpu_custom_call.1} parent=5 // pred_fallthru
        _
      %p499 = scmp.lt.s32.totalorder %s36, 4
      // Predicated region
      $region61: #{tpu_custom_call.1} parent=5 // pred_check
        %p500 = pneg %p499
      $region62: #{tpu_custom_call.1} parent=5 // pred_check_branch
        %502 = sbr.rel (%p500) target = $region64
      $region63: #{tpu_custom_call.1} parent=5 // pred_region
        // Predicated region
        $region65: #{tpu_custom_call.1} parent=63 // pred_check
          %p503 = pneg %p68
        $region66: #{tpu_custom_call.1} parent=63 // pred_check_branch
          %505 = sbr.rel (%p503) target = $region68
        $region67: #{tpu_custom_call.1} parent=63 // pred_region
          %s506 = sand.u32 %s58, 1
          %s507 = scalar_lea.sflag [#allocation4], %s506
          %s508 = sand.u32 %s58, 1
          %s509 = smul.addr %s508, 8
          %s510 = scalar_lea.vmem [#allocation3], %s509
          %s512 = ssub.s32 128, 128
          %513 = vsyncadd %s507, %s512
          %s514 = smul.addr %s43, 128
          %s515 = scalar_lea.hbm %s0, %s514
          %s517 = sshll.u32 %s510, 4
          %s518 = int_to_ptr.vmem [resolvable:$true] %s517
          %520 = dma.hbm_to_vmem [thread:$0]  %s515, 128, %s518, %s507
        $region68: #{tpu_custom_call.1} parent=63 // pred_fallthru
          _
        // Predicated region
        $region69: #{tpu_custom_call.1} parent=63 // pred_check
          %p521 = pneg %p96
        $region70: #{tpu_custom_call.1} parent=63 // pred_check_branch
          %523 = sbr.rel (%p521) target = $region72
        $region71: #{tpu_custom_call.1} parent=63 // pred_region
          %s524 = sand.u32 %s36, 1
          %s525 = scalar_lea.sflag [#allocation7], %s524
          %s526 = sand.u32 %s86, 1
          %s527 = smul.addr %s526, 64
          %s528 = scalar_lea.vmem [#allocation6], %s527
          %s530 = ssub.s32 1024, 1024
          %531 = vsyncadd %s525, %s530
          %s532 = smul.addr %s43, 16
          %s533 = sadd.s32 %s44, %s532
          %s534 = smul.addr %s533, 128
          %s535 = scalar_lea.hbm %s1, %s534
          %s536 = sshll.u32 %s528, 4
          %s537 = int_to_ptr.vmem [resolvable:$true] %s536
          %542 = dma.hbm_to_vmem [thread:$0]  %s535, 1024, %s537, %s525, 256, 128, 8
        $region72: #{tpu_custom_call.1} parent=63 // pred_fallthru
          _
      $region64: #{tpu_custom_call.1} parent=5 // pred_fallthru
        _
      %p543 = scmp.le.s32.totalorder 1, %s36
      %p544 = scmp.lt.s32.totalorder %s36, 5
      %p545 = pnand %p543, %p544
      %p546 = pneg %p545
      // Predicated region
      $region73: #{tpu_custom_call.1} parent=5 // pred_check
        _
      $region74: #{tpu_custom_call.1} parent=5 // pred_check_branch
        %548 = sbr.rel (%p545) target = $region76
      $region75: #{tpu_custom_call.1} parent=5 // pred_region
        %s549 = ssub.s32 %s36, 1
        %s550 = sand.u32 %s61, 1
        %s551 = scalar_lea.sflag [#allocation4], %s550
        %s552 = sand.u32 %s61, 1
        %s553 = smul.addr %s552, 8
        %s554 = scalar_lea.vmem [#allocation3], %s553
        // Predicated region
        $region77: #{tpu_custom_call.1} parent=75 // pred_check
          %p555 = pneg %p74
        $region78: #{tpu_custom_call.1} parent=75 // pred_check_branch
          %557 = sbr.rel (%p555) target = $region80
        $region79: #{tpu_custom_call.1} parent=75 // pred_region
          %558 = dma.done %s551, 128
        $region80: #{tpu_custom_call.1} parent=75 // pred_fallthru
          _
        %s559 = sand.u32 %s41, 1
        %s560 = scalar_lea.sflag [#allocation7], %s559
        %s561 = sand.u32 %s89, 1
        %s562 = smul.addr %s561, 64
        %s563 = scalar_lea.vmem [#allocation6], %s562
        // Predicated region
        $region81: #{tpu_custom_call.1} parent=75 // pred_check
          %p564 = pneg %p102
        $region82: #{tpu_custom_call.1} parent=75 // pred_check_branch
          %566 = sbr.rel (%p564) target = $region84
        $region83: #{tpu_custom_call.1} parent=75 // pred_region
          %567 = dma.done %s560, 1024
        $region84: #{tpu_custom_call.1} parent=75 // pred_fallthru
          _
        // Predicated region
        $region85: #{tpu_custom_call.1} parent=75 // pred_check
          %p568 = pneg %p207
        $region86: #{tpu_custom_call.1} parent=75 // pred_check_branch
          %570 = sbr.rel (%p568) target = $region88
        $region87: #{tpu_custom_call.1} parent=75 // pred_region
          %571 = dma.done [#allocation7], 512
        $region88: #{tpu_custom_call.1} parent=75 // pred_fallthru
          _
        // Predicated region
        $region89: #{tpu_custom_call.1} parent=75 // pred_check
          %p572 = pneg %p249
        $region90: #{tpu_custom_call.1} parent=75 // pred_check_branch
          %574 = sbr.rel (%p572) target = $region92
        $region91: #{tpu_custom_call.1} parent=75 // pred_region
          %575 = dma.done [#allocation10], 512
        $region92: #{tpu_custom_call.1} parent=75 // pred_fallthru
          _
        // Predicated region
        $region93: #{tpu_custom_call.1} parent=75 // pred_check
          %p576 = pneg %p270
        $region94: #{tpu_custom_call.1} parent=75 // pred_check_branch
          %578 = sbr.rel (%p576) target = $region96
        $region95: #{tpu_custom_call.1} parent=75 // pred_region
          %579 = dma.done [#allocation10], 16
        $region96: #{tpu_custom_call.1} parent=75 // pred_fallthru
          _
        // Predicated region
        $region97: #{tpu_custom_call.1} parent=75 // pred_check
          %p580 = pneg %p333
        $region98: #{tpu_custom_call.1} parent=75 // pred_check_branch
          %582 = sbr.rel (%p580) target = $region100
        $region99: #{tpu_custom_call.1} parent=75 // pred_region
          %583 = dma.done [#allocation13], 512
        $region100: #{tpu_custom_call.1} parent=75 // pred_fallthru
          _
        %s584 = sand.u32 %s61, 1
        %s585 = scalar_lea.sflag [#allocation4], %s584
        %s586 = sand.u32 %s61, 1
        %s587 = smul.addr %s586, 8
        %s588 = scalar_lea.vmem [#allocation3], %s587
        %p589 = pneg %p74
        %p590 = pneg %p71
        %s591 = sand.u32 %s41, 1
        %s592 = scalar_lea.sflag [#allocation7], %s591
        %s593 = sand.u32 %s89, 1
        %s594 = smul.addr %s593, 64
        %s595 = scalar_lea.vmem [#allocation6], %s594
        %p596 = pneg %p102
        %p597 = pneg %p99
        %p598 = pneg %p123
        %p599 = pneg %p120
        %p600 = pneg %p144
        %p601 = pneg %p141
        %p602 = pneg %p165
        %p603 = pneg %p162
        %p604 = pneg %p186
        %p605 = pneg %p183
        %p606 = pneg %p207
        %p607 = pneg %p204
        %p608 = pneg %p228
        %p609 = pneg %p225
        %p610 = pneg %p249
        %p611 = pneg %p246
        %p612 = pneg %p270
        %p613 = pneg %p267
        %p614 = pneg %p291
        %p615 = pneg %p288
        %p616 = pneg %p312
        %p617 = pneg %p309
        %p618 = pneg %p333
        %p619 = pneg %p330
        %p620 = pneg %p354
        %p621 = pneg %p351
        %p622 = pneg %p382
        %p623 = pneg %p379
        %s624 = sand.u32 %s369, 1
        %s625 = scalar_lea.sflag [#allocation5], %s624
        %s626 = sand.u32 %s369, 1
        %s627 = smul.addr %s626, 32
        %s628 = scalar_lea.vmem [#allocation14], %s627
        %p629 = pneg %p410
        %p630 = pneg %p407
        %s631 = sand.u32 %s397, 1
        %s632 = scalar_lea.sflag [#allocation16], %s631
        %s633 = sand.u32 %s397, 1
        %s634 = smul.addr %s633, 16
        %s635 = scalar_lea.vmem [#allocation15], %s634
        %p636 = scmp.eq.s32.totalorder %s46, 0
        // Predicated region
        $region101: #{tpu_custom_call.1} parent=75 // pred_check
          %p637 = pneg %p636
        $region102: #{tpu_custom_call.1} parent=75 // pred_check_branch
          %639 = sbr.rel (%p637) target = $region104
        $region103: #{tpu_custom_call.1} parent=75 // pred_region
          %v640 = vld [vmem:[%s554] sm:$0xff]
          %vm641 = vcmask 261120
          %v642 = vsel %vm641, %v640, 0.0
          %643 = vadd.xlane.f32.xlu0 %v642
          %v644 = vpop.xlane.xlu0 %643
          %v645 = vrcp.pop 32.0
          %v646 = vmul.f32 %v644, %v645
          %v647 = vsub.f32 %v640, %v646
          %v648 = vmul.f32 %v647, %v647
          %v649 = vsel %vm641, %v648, 0.0
          %650 = vadd.xlane.f32.xlu0 %v649
          %v651 = vpop.xlane.xlu0 %650
          %v652 = vmul.f32 %v651, %v645
          %v653 = vadd.f32 %v652, 1e-05
          %v654 = vrsqrt.pop %v653
          %v655 = vmul.f32 %v647, %v654
          %v656 = vld [vmem:[%s4] sm:$0x1]
          %v658 = vlaneseq
          %v659 = vshrl.u32 %v658, 7
          %v660 = vsub.s32 0, %v659
          %v661 = vrot.slane %v656, %v660
          %v663 = vmul.f32 %v655, %v661
          %v664 = vld [vmem:[%s5] sm:$0x1]
          %v666 = vlaneseq
          %v667 = vshrl.u32 %v666, 7
          %v668 = vsub.s32 0, %v667
          %v669 = vrot.slane %v664, %v668
          %v671 = vadd.f32 %v663, %v669
          %v672 = vld [vmem:[#allocation8] sm:$0xff]
          %v673 = vld [vmem:[#allocation8 + $0x8] sm:$0xff]
          %v674 = vld [vmem:[#allocation8 + $0x10] sm:$0xff]
          %v675 = vld [vmem:[#allocation8 + $0x18] sm:$0xff]
          %v676 = vld [vmem:[%s7] sm:$0x1]
          %v678 = vlaneseq
          %v679 = vshrl.u32 %v678, 7
          %v680 = vsub.s32 0, %v679
          %v681 = vrot.slane %v676, %v680
          %v684 = vsel %vm641, %v671, 0
          %686 = vmatprep.subr.mxu0 0.0
          %687 = vmatpush1.msra.mxu0 %v672
          %688 = vmatprep.subr.mxu0 0.0
          %689 = vmatpush1.msra.mxu0 %v673
          %690 = vmatprep.subr.mxu0 0.0
          %691 = vmatpush1.msra.mxu0 %v674
          %692 = vmatprep.subr.mxu0 0.0
          %693 = vmatpush1.msra.mxu0 %v675
          %694 = vmatprep.subr.mxu0 0.0
          %695 = vmatpush1.msra.mxu0 0.0
          %696 = vmatprep.subr.mxu0 0.0
          %697 = vmatpush1.msra.mxu0 0.0
          %698 = vmatprep.subr.mxu0 0.0
          %699 = vmatpush1.msra.mxu0 0.0
          %700 = vmatprep.subr.mxu0 0.0
          %701 = vmatpush1.msra.mxu0 0.0
          %702 = vmatprep.subr.mxu0 0.0
          %703 = vmatpush1.msra.mxu0 0.0
          %704 = vmatprep.subr.mxu0 0.0
          %705 = vmatpush1.msra.mxu0 0.0
          %706 = vmatprep.subr.mxu0 0.0
          %707 = vmatpush1.msra.mxu0 0.0
          %708 = vmatprep.subr.mxu0 0.0
          %709 = vmatpush1.msra.mxu0 0.0
          %710 = vmatprep.subr.mxu0 0.0
          %711 = vmatpush1.msra.mxu0 0.0
          %712 = vmatprep.subr.mxu0 0.0
          %713 = vmatpush1.msra.mxu0 0.0
          %714 = vmatprep.subr.mxu0 0.0
          %715 = vmatpush1.msra.mxu0 0.0
          %716 = vmatprep.subr.mxu0 0.0
          %717 = vmatpush1.msra.mxu0 0.0
          %718 = vmatprep.subr.mxu0 0.0
          %719 = vmatpush1.msra.mxu0 0.0
          %720 = vmatprep.subr.mxu0 0.0
          %721 = vmatpush1.msra.mxu0 0.0
          %722 = vmatprep.subr.mxu0 0.0
          %723 = vmatpush1.msra.mxu0 0.0
          %724 = vmatprep.subr.mxu0 0.0
          %725 = vmatpush1.msra.mxu0 0.0
          %726 = vmatprep.subr.mxu0 0.0
          %727 = vmatpush1.msra.mxu0 0.0
          %728 = vmatprep.subr.mxu0 0.0
          %729 = vmatpush1.msra.mxu0 0.0
          %730 = vmatprep.subr.mxu0 0.0
          %731 = vmatpush1.msra.mxu0 0.0
          %732 = vmatprep.subr.mxu0 0.0
          %733 = vmatpush1.msra.mxu0 0.0
          %734 = vmatprep.subr.mxu0 0.0
          %735 = vmatpush1.msra.mxu0 0.0
          %736 = vmatprep.subr.mxu0 0.0
          %737 = vmatpush1.msra.mxu0 0.0
          %738 = vmatprep.subr.mxu0 0.0
          %739 = vmatpush1.msra.mxu0 0.0
          %740 = vmatprep.subr.mxu0 0.0
          %741 = vmatpush1.msra.mxu0 0.0
          %742 = vmatprep.subr.mxu0 0.0
          %743 = vmatpush1.msra.mxu0 0.0
          %744 = vmatprep.subr.mxu0 0.0
          %745 = vmatpush1.msra.mxu0 0.0
          %746 = vmatprep.subr.mxu0 0.0
          %747 = vmatpush1.msra.mxu0 0.0
          %748 = vmatprep.subr.mxu0 0.0
          %749 = vmatpush1.msra.mxu0 0.0
          %750 = vmatprep.mubr.f32.mxu0 0.0
          %751 = vmatmul.mubr.f32.gmra.mrb[0].mxu0 %v684
          %v752 = vpop.f32.mrb[0].mxu0
          %v753 = vadd.f32 %v681, %v752
          %v754 = vpop.f32.mrb[0].mxu0
          %755 = vdwg.mxu0
          %v756 = vmax.f32 %v753, 0.0
          %v757 = vld [vmem:[#allocation9] sm:$0xff]
          %v758 = vld [vmem:[#allocation9 + $0x8] sm:$0xff]
          %v759 = vld [vmem:[#allocation9 + $0x10] sm:$0xff]
          %v760 = vld [vmem:[#allocation9 + $0x18] sm:$0xff]
          %v761 = vld [vmem:[#allocation11] sm:$0x1]
          %v763 = vlaneseq
          %v764 = vshrl.u32 %v763, 7
          %v765 = vsub.s32 0, %v764
          %v766 = vrot.slane %v761, %v765
          %v769 = vsel %vm641, %v756, 0
          %771 = vmatprep.subr.mxu0 0.0
          %772 = vmatpush1.msra.mxu0 %v757
          %773 = vmatprep.subr.mxu0 0.0
          %774 = vmatpush1.msra.mxu0 %v758
          %775 = vmatprep.subr.mxu0 0.0
          %776 = vmatpush1.msra.mxu0 %v759
          %777 = vmatprep.subr.mxu0 0.0
          %778 = vmatpush1.msra.mxu0 %v760
          %779 = vmatprep.subr.mxu0 0.0
          %780 = vmatpush1.msra.mxu0 0.0
          %781 = vmatprep.subr.mxu0 0.0
          %782 = vmatpush1.msra.mxu0 0.0
          %783 = vmatprep.subr.mxu0 0.0
          %784 = vmatpush1.msra.mxu0 0.0
          %785 = vmatprep.subr.mxu0 0.0
          %786 = vmatpush1.msra.mxu0 0.0
          %787 = vmatprep.subr.mxu0 0.0
          %788 = vmatpush1.msra.mxu0 0.0
          %789 = vmatprep.subr.mxu0 0.0
          %790 = vmatpush1.msra.mxu0 0.0
          %791 = vmatprep.subr.mxu0 0.0
          %792 = vmatpush1.msra.mxu0 0.0
          %793 = vmatprep.subr.mxu0 0.0
          %794 = vmatpush1.msra.mxu0 0.0
          %795 = vmatprep.subr.mxu0 0.0
          %796 = vmatpush1.msra.mxu0 0.0
          %797 = vmatprep.subr.mxu0 0.0
          %798 = vmatpush1.msra.mxu0 0.0
          %799 = vmatprep.subr.mxu0 0.0
          %800 = vmatpush1.msra.mxu0 0.0
          %801 = vmatprep.subr.mxu0 0.0
          %802 = vmatpush1.msra.mxu0 0.0
          %803 = vmatprep.subr.mxu0 0.0
          %804 = vmatpush1.msra.mxu0 0.0
          %805 = vmatprep.subr.mxu0 0.0
          %806 = vmatpush1.msra.mxu0 0.0
          %807 = vmatprep.subr.mxu0 0.0
          %808 = vmatpush1.msra.mxu0 0.0
          %809 = vmatprep.subr.mxu0 0.0
          %810 = vmatpush1.msra.mxu0 0.0
          %811 = vmatprep.subr.mxu0 0.0
          %812 = vmatpush1.msra.mxu0 0.0
          %813 = vmatprep.subr.mxu0 0.0
          %814 = vmatpush1.msra.mxu0 0.0
          %815 = vmatprep.subr.mxu0 0.0
          %816 = vmatpush1.msra.mxu0 0.0
          %817 = vmatprep.subr.mxu0 0.0
          %818 = vmatpush1.msra.mxu0 0.0
          %819 = vmatprep.subr.mxu0 0.0
          %820 = vmatpush1.msra.mxu0 0.0
          %821 = vmatprep.subr.mxu0 0.0
          %822 = vmatpush1.msra.mxu0 0.0
          %823 = vmatprep.subr.mxu0 0.0
          %824 = vmatpush1.msra.mxu0 0.0
          %825 = vmatprep.subr.mxu0 0.0
          %826 = vmatpush1.msra.mxu0 0.0
          %827 = vmatprep.subr.mxu0 0.0
          %828 = vmatpush1.msra.mxu0 0.0
          %829 = vmatprep.subr.mxu0 0.0
          %830 = vmatpush1.msra.mxu0 0.0
          %831 = vmatprep.subr.mxu0 0.0
          %832 = vmatpush1.msra.mxu0 0.0
          %833 = vmatprep.subr.mxu0 0.0
          %834 = vmatpush1.msra.mxu0 0.0
          %835 = vmatprep.mubr.f32.mxu0 0.0
          %836 = vmatmul.mubr.f32.gmra.mrb[0].mxu0 %v769
          %v837 = vpop.f32.mrb[0].mxu0
          %v838 = vadd.f32 %v766, %v837
          %v839 = vpop.f32.mrb[0].mxu0
          %840 = vdwg.mxu0
          %v841 = vmax.f32 %v838, 0.0
          %v842 = vld [vmem:[%s10] sm:$0xff]
          %v843 = vld [vmem:[%s10 + $0x8] sm:$0xff]
          %v844 = vld [vmem:[%s10 + $0x10] sm:$0xff]
          %v845 = vld [vmem:[%s10 + $0x18] sm:$0xff]
          %v846 = vld [vmem:[%s11] sm:$0x1]
          %v848 = vlaneseq
          %v849 = vshrl.u32 %v848, 7
          %v850 = vsub.s32 0, %v849
          %v851 = vrot.slane %v846, %v850
          %v854 = vsel %vm641, %v841, 0
          %856 = vmatprep.subr.mxu0 0.0
          %857 = vmatpush1.msra.mxu0 %v842
          %858 = vmatprep.subr.mxu0 0.0
          %859 = vmatpush1.msra.mxu0 %v843
          %860 = vmatprep.subr.mxu0 0.0
          %861 = vmatpush1.msra.mxu0 %v844
          %862 = vmatprep.subr.mxu0 0.0
          %863 = vmatpush1.msra.mxu0 %v845
          %864 = vmatprep.subr.mxu0 0.0
          %865 = vmatpush1.msra.mxu0 0.0
          %866 = vmatprep.subr.mxu0 0.0
          %867 = vmatpush1.msra.mxu0 0.0
          %868 = vmatprep.subr.mxu0 0.0
          %869 = vmatpush1.msra.mxu0 0.0
          %870 = vmatprep.subr.mxu0 0.0
          %871 = vmatpush1.msra.mxu0 0.0
          %872 = vmatprep.subr.mxu0 0.0
          %873 = vmatpush1.msra.mxu0 0.0
          %874 = vmatprep.subr.mxu0 0.0
          %875 = vmatpush1.msra.mxu0 0.0
          %876 = vmatprep.subr.mxu0 0.0
          %877 = vmatpush1.msra.mxu0 0.0
          %878 = vmatprep.subr.mxu0 0.0
          %879 = vmatpush1.msra.mxu0 0.0
          %880 = vmatprep.subr.mxu0 0.0
          %881 = vmatpush1.msra.mxu0 0.0
          %882 = vmatprep.subr.mxu0 0.0
          %883 = vmatpush1.msra.mxu0 0.0
          %884 = vmatprep.subr.mxu0 0.0
          %885 = vmatpush1.msra.mxu0 0.0
          %886 = vmatprep.subr.mxu0 0.0
          %887 = vmatpush1.msra.mxu0 0.0
          %888 = vmatprep.subr.mxu0 0.0
          %889 = vmatpush1.msra.mxu0 0.0
          %890 = vmatprep.subr.mxu0 0.0
          %891 = vmatpush1.msra.mxu0 0.0
          %892 = vmatprep.subr.mxu0 0.0
          %893 = vmatpush1.msra.mxu0 0.0
          %894 = vmatprep.subr.mxu0 0.0
          %895 = vmatpush1.msra.mxu0 0.0
          %896 = vmatprep.subr.mxu0 0.0
          %897 = vmatpush1.msra.mxu0 0.0
          %898 = vmatprep.subr.mxu0 0.0
          %899 = vmatpush1.msra.mxu0 0.0
          %900 = vmatprep.subr.mxu0 0.0
          %901 = vmatpush1.msra.mxu0 0.0
          %902 = vmatprep.subr.mxu0 0.0
          %903 = vmatpush1.msra.mxu0 0.0
          %904 = vmatprep.subr.mxu0 0.0
          %905 = vmatpush1.msra.mxu0 0.0
          %906 = vmatprep.subr.mxu0 0.0
          %907 = vmatpush1.msra.mxu0 0.0
          %908 = vmatprep.subr.mxu0 0.0
          %909 = vmatpush1.msra.mxu0 0.0
          %910 = vmatprep.subr.mxu0 0.0
          %911 = vmatpush1.msra.mxu0 0.0
          %912 = vmatprep.subr.mxu0 0.0
          %913 = vmatpush1.msra.mxu0 0.0
          %914 = vmatprep.subr.mxu0 0.0
          %915 = vmatpush1.msra.mxu0 0.0
          %916 = vmatprep.subr.mxu0 0.0
          %917 = vmatpush1.msra.mxu0 0.0
          %918 = vmatprep.subr.mxu0 0.0
          %919 = vmatpush1.msra.mxu0 0.0
          %920 = vmatprep.mubr.f32.mxu0 0.0
          %921 = vmatmul.mubr.f32.gmra.mrb[0].mxu0 %v854
          %v922 = vpop.f32.mrb[0].mxu0
          %v923 = vadd.f32 %v851, %v922
          %v924 = vpop.f32.mrb[0].mxu0
          %925 = vdwg.mxu0
          %v926 = vld [vmem:[#allocation12] sm:$0xff]
          %v927 = vld [vmem:[#allocation12 + $0x8] sm:$0xff]
          %v928 = vld [vmem:[#allocation12 + $0x10] sm:$0xff]
          %v929 = vld [vmem:[#allocation12 + $0x18] sm:$0xff]
          %v930 = vld [vmem:[%s13] sm:$0x1]
          %v932 = vlaneseq
          %v933 = vshrl.u32 %v932, 7
          %v934 = vsub.s32 0, %v933
          %v935 = vrot.slane %v930, %v934
          %937 = vmatprep.subr.mxu0 0.0
          %938 = vmatpush1.msra.mxu0 %v926
          %939 = vmatprep.subr.mxu0 0.0
          %940 = vmatpush1.msra.mxu0 %v927
          %941 = vmatprep.subr.mxu0 0.0
          %942 = vmatpush1.msra.mxu0 %v928
          %943 = vmatprep.subr.mxu0 0.0
          %944 = vmatpush1.msra.mxu0 %v929
          %945 = vmatprep.subr.mxu0 0.0
          %946 = vmatpush1.msra.mxu0 0.0
          %947 = vmatprep.subr.mxu0 0.0
          %948 = vmatpush1.msra.mxu0 0.0
          %949 = vmatprep.subr.mxu0 0.0
          %950 = vmatpush1.msra.mxu0 0.0
          %951 = vmatprep.subr.mxu0 0.0
          %952 = vmatpush1.msra.mxu0 0.0
          %953 = vmatprep.subr.mxu0 0.0
          %954 = vmatpush1.msra.mxu0 0.0
          %955 = vmatprep.subr.mxu0 0.0
          %956 = vmatpush1.msra.mxu0 0.0
          %957 = vmatprep.subr.mxu0 0.0
          %958 = vmatpush1.msra.mxu0 0.0
          %959 = vmatprep.subr.mxu0 0.0
          %960 = vmatpush1.msra.mxu0 0.0
          %961 = vmatprep.subr.mxu0 0.0
          %962 = vmatpush1.msra.mxu0 0.0
          %963 = vmatprep.subr.mxu0 0.0
          %964 = vmatpush1.msra.mxu0 0.0
          %965 = vmatprep.subr.mxu0 0.0
          %966 = vmatpush1.msra.mxu0 0.0
          %967 = vmatprep.subr.mxu0 0.0
          %968 = vmatpush1.msra.mxu0 0.0
          %969 = vmatprep.subr.mxu0 0.0
          %970 = vmatpush1.msra.mxu0 0.0
          %971 = vmatprep.subr.mxu0 0.0
          %972 = vmatpush1.msra.mxu0 0.0
          %973 = vmatprep.subr.mxu0 0.0
          %974 = vmatpush1.msra.mxu0 0.0
          %975 = vmatprep.subr.mxu0 0.0
          %976 = vmatpush1.msra.mxu0 0.0
          %977 = vmatprep.subr.mxu0 0.0
          %978 = vmatpush1.msra.mxu0 0.0
          %979 = vmatprep.subr.mxu0 0.0
          %980 = vmatpush1.msra.mxu0 0.0
          %981 = vmatprep.subr.mxu0 0.0
          %982 = vmatpush1.msra.mxu0 0.0
          %983 = vmatprep.subr.mxu0 0.0
          %984 = vmatpush1.msra.mxu0 0.0
          %985 = vmatprep.subr.mxu0 0.0
          %986 = vmatpush1.msra.mxu0 0.0
          %987 = vmatprep.subr.mxu0 0.0
          %988 = vmatpush1.msra.mxu0 0.0
          %989 = vmatprep.subr.mxu0 0.0
          %990 = vmatpush1.msra.mxu0 0.0
          %991 = vmatprep.subr.mxu0 0.0
          %992 = vmatpush1.msra.mxu0 0.0
          %993 = vmatprep.subr.mxu0 0.0
          %994 = vmatpush1.msra.mxu0 0.0
          %995 = vmatprep.subr.mxu0 0.0
          %996 = vmatpush1.msra.mxu0 0.0
          %997 = vmatprep.subr.mxu0 0.0
          %998 = vmatpush1.msra.mxu0 0.0
          %999 = vmatprep.subr.mxu0 0.0
          %1000 = vmatpush1.msra.mxu0 0.0
          %1001 = vmatprep.mubr.f32.mxu0 0.0
          %1002 = vmatmul.mubr.f32.gmra.mrb[0].mxu0 %v854
          %v1003 = vpop.f32.mrb[0].mxu0
          %v1004 = vadd.f32 %v935, %v1003
          %v1005 = vpop.f32.mrb[0].mxu0
          %1006 = vdwg.mxu0
          %1007 = vst.msk [vmem:[#allocation2] sm:$0xff] %vm641, %v923
          %1008 = vst.msk [vmem:[#allocation2 + $0x8] sm:$0xff] %vm641, %v1004
        $region104: #{tpu_custom_call.1} parent=75 // pred_fallthru
          _
        %v1009 = vld [vmem:[%s2] sm:$0xff]
        %v1010 = vld [vmem:[%s2 + $0x8] sm:$0xff]
        %v1011 = vld [vmem:[%s2 + $0x10] sm:$0xff]
        %v1012 = vld [vmem:[%s2 + $0x18] sm:$0xff]
        %v1013 = vld [vmem:[%s563] sm:$0xff]
        %v1014 = vld [vmem:[%s563 + $0x8] sm:$0xff]
        %v1015 = vld [vmem:[%s563 + $0x10] sm:$0xff]
        %v1016 = vld [vmem:[%s563 + $0x18] sm:$0xff]
        %v1017 = vld [vmem:[%s563 + $0x20] sm:$0xff]
        %v1018 = vld [vmem:[%s563 + $0x28] sm:$0xff]
        %v1019 = vld [vmem:[%s563 + $0x30] sm:$0xff]
        %v1020 = vld [vmem:[%s563 + $0x38] sm:$0xff]
        %v1021 = vld [vmem:[%s3] sm:$0xff]
        %v1022 = vld [vmem:[%s3 + $0x8] sm:$0xff]
        %v1023 = vld [vmem:[%s3 + $0x10] sm:$0xff]
        %v1024 = vld [vmem:[%s3 + $0x18] sm:$0xff]
        %1026 = vset.pattern.permute.xlu0 0
        %1027 = vperm.xlu0 %1026, %v1021
        %v1028 = vpop.permute.xlu0 %1027
        %1031 = vset.pattern.permute.xlu0 0
        %1032 = vperm.xlu0 %1031, %v1022
        %v1033 = vpop.permute.xlu0 %1032
        %1036 = vset.pattern.permute.xlu0 0
        %1037 = vperm.xlu0 %1036, %v1023
        %v1038 = vpop.permute.xlu0 %1037
        %1041 = vset.pattern.permute.xlu0 0
        %1042 = vperm.xlu0 %1041, %v1024
        %v1043 = vpop.permute.xlu0 %1042
        %vm1045 = vcmask 523264
        %v1047 = vsel %vm1045, %v1009, 0
        %v1050 = vsel %vm1045, %v1010, 0
        %v1053 = vsel %vm1045, %v1011, 0
        %v1056 = vsel %vm1045, %v1012, 0
        %1058 = vmatprep.subr.mxu0 0.0
        %1059 = vmatpush1.msra.mxu0 %v1013
        %1060 = vmatprep.subr.mxu0 0.0
        %1061 = vmatpush1.msra.mxu0 %v1014
        %1062 = vmatprep.subr.mxu0 0.0
        %1063 = vmatpush1.msra.mxu0 %v1015
        %1064 = vmatprep.subr.mxu0 0.0
        %1065 = vmatpush1.msra.mxu0 %v1016
        %1066 = vmatprep.subr.mxu0 0.0
        %1067 = vmatpush1.msra.mxu0 %v1017
        %1068 = vmatprep.subr.mxu0 0.0
        %1069 = vmatpush1.msra.mxu0 %v1018
        %1070 = vmatprep.subr.mxu0 0.0
        %1071 = vmatpush1.msra.mxu0 %v1019
        %1072 = vmatprep.subr.mxu0 0.0
        %1073 = vmatpush1.msra.mxu0 %v1020
        %1074 = vmatprep.subr.mxu0 0.0
        %1075 = vmatpush1.msra.mxu0 0.0
        %1076 = vmatprep.subr.mxu0 0.0
        %1077 = vmatpush1.msra.mxu0 0.0
        %1078 = vmatprep.subr.mxu0 0.0
        %1079 = vmatpush1.msra.mxu0 0.0
        %1080 = vmatprep.subr.mxu0 0.0
        %1081 = vmatpush1.msra.mxu0 0.0
        %1082 = vmatprep.subr.mxu0 0.0
        %1083 = vmatpush1.msra.mxu0 0.0
        %1084 = vmatprep.subr.mxu0 0.0
        %1085 = vmatpush1.msra.mxu0 0.0
        %1086 = vmatprep.subr.mxu0 0.0
        %1087 = vmatpush1.msra.mxu0 0.0
        %1088 = vmatprep.subr.mxu0 0.0
        %1089 = vmatpush1.msra.mxu0 0.0
        %1090 = vmatprep.subr.mxu0 0.0
        %1091 = vmatpush1.msra.mxu0 0.0
        %1092 = vmatprep.subr.mxu0 0.0
        %1093 = vmatpush1.msra.mxu0 0.0
        %1094 = vmatprep.subr.mxu0 0.0
        %1095 = vmatpush1.msra.mxu0 0.0
        %1096 = vmatprep.subr.mxu0 0.0
        %1097 = vmatpush1.msra.mxu0 0.0
        %1098 = vmatprep.subr.mxu0 0.0
        %1099 = vmatpush1.msra.mxu0 0.0
        %1100 = vmatprep.subr.mxu0 0.0
        %1101 = vmatpush1.msra.mxu0 0.0
        %1102 = vmatprep.subr.mxu0 0.0
        %1103 = vmatpush1.msra.mxu0 0.0
        %1104 = vmatprep.subr.mxu0 0.0
        %1105 = vmatpush1.msra.mxu0 0.0
        %1106 = vmatprep.subr.mxu0 0.0
        %1107 = vmatpush1.msra.mxu0 0.0
        %1108 = vmatprep.subr.mxu0 0.0
        %1109 = vmatpush1.msra.mxu0 0.0
        %1110 = vmatprep.subr.mxu0 0.0
        %1111 = vmatpush1.msra.mxu0 0.0
        %1112 = vmatprep.subr.mxu0 0.0
        %1113 = vmatpush1.msra.mxu0 0.0
        %1114 = vmatprep.subr.mxu0 0.0
        %1115 = vmatpush1.msra.mxu0 0.0
        %1116 = vmatprep.subr.mxu0 0.0
        %1117 = vmatpush1.msra.mxu0 0.0
        %1118 = vmatprep.subr.mxu0 0.0
        %1119 = vmatpush1.msra.mxu0 0.0
        %1120 = vmatprep.subr.mxu0 0.0
        %1121 = vmatpush1.msra.mxu0 0.0
        %1122 = vmatprep.mubr.f32.mxu0 0.0
        %1123 = vmatmul.mubr.f32.gmra.mrb[0].mxu0 %v1047
        %v1124 = vpop.f32.mrb[0].mxu0
        %v1125 = vadd.f32 %v1028, %v1124
        %v1126 = vpop.f32.mrb[0].mxu0
        %1127 = vmatprep.mubr.f32.mxu0 0.0
        %1128 = vmatmul.mubr.f32.gmra.mrb[0].mxu0 %v1050
        %v1129 = vpop.f32.mrb[0].mxu0
        %v1130 = vadd.f32 %v1033, %v1129
        %v1131 = vpop.f32.mrb[0].mxu0
        %1132 = vmatprep.mubr.f32.mxu0 0.0
        %1133 = vmatmul.mubr.f32.gmra.mrb[0].mxu0 %v1053
        %v1134 = vpop.f32.mrb[0].mxu0
        %v1135 = vadd.f32 %v1038, %v1134
        %v1136 = vpop.f32.mrb[0].mxu0
        %1137 = vmatprep.mubr.f32.mxu0 0.0
        %1138 = vmatmul.mubr.f32.gmra.mrb[0].mxu0 %v1056
        %v1139 = vpop.f32.mrb[0].mxu0
        %v1140 = vadd.f32 %v1043, %v1139
        %v1141 = vpop.f32.mrb[0].mxu0
        %1142 = vdwg.mxu0
        %1143 = vst [vmem:[%s628] sm:$0xff] %v1125
        %1144 = vst [vmem:[%s628 + $0x8] sm:$0xff] %v1130
        %1145 = vst [vmem:[%s628 + $0x10] sm:$0xff] %v1135
        %1146 = vst [vmem:[%s628 + $0x18] sm:$0xff] %v1140
        %v1147 = vld [vmem:[#allocation2] sm:$0xff]
        %v1148 = vld [vmem:[#allocation2 + $0x8] sm:$0xff]
        %vm1149 = vcmask 261120
        %v1151 = vsel %vm1149, %v1147, 0
        %v1154 = vsel %vm1149, %v1148, 0
        %1156 = vmatprep.subr.mxu0 0.0
        %1157 = vmatpush1.msra.mxu0 %v1125
        %1158 = vmatprep.subr.mxu0 0.0
        %1159 = vmatpush1.msra.mxu0 %v1130
        %1160 = vmatprep.subr.mxu0 0.0
        %1161 = vmatpush1.msra.mxu0 %v1135
        %1162 = vmatprep.subr.mxu0 0.0
        %1163 = vmatpush1.msra.mxu0 %v1140
        %1164 = vmatprep.subr.mxu0 0.0
        %1165 = vmatpush1.msra.mxu0 0.0
        %1166 = vmatprep.subr.mxu0 0.0
        %1167 = vmatpush1.msra.mxu0 0.0
        %1168 = vmatprep.subr.mxu0 0.0
        %1169 = vmatpush1.msra.mxu0 0.0
        %1170 = vmatprep.subr.mxu0 0.0
        %1171 = vmatpush1.msra.mxu0 0.0
        %1172 = vmatprep.subr.mxu0 0.0
        %1173 = vmatpush1.msra.mxu0 0.0
        %1174 = vmatprep.subr.mxu0 0.0
        %1175 = vmatpush1.msra.mxu0 0.0
        %1176 = vmatprep.subr.mxu0 0.0
        %1177 = vmatpush1.msra.mxu0 0.0
        %1178 = vmatprep.subr.mxu0 0.0
        %1179 = vmatpush1.msra.mxu0 0.0
        %1180 = vmatprep.subr.mxu0 0.0
        %1181 = vmatpush1.msra.mxu0 0.0
        %1182 = vmatprep.subr.mxu0 0.0
        %1183 = vmatpush1.msra.mxu0 0.0
        %1184 = vmatprep.subr.mxu0 0.0
        %1185 = vmatpush1.msra.mxu0 0.0
        %1186 = vmatprep.subr.mxu0 0.0
        %1187 = vmatpush1.msra.mxu0 0.0
        %1188 = vmatprep.subr.mxu0 0.0
        %1189 = vmatpush1.msra.mxu0 0.0
        %1190 = vmatprep.subr.mxu0 0.0
        %1191 = vmatpush1.msra.mxu0 0.0
        %1192 = vmatprep.subr.mxu0 0.0
        %1193 = vmatpush1.msra.mxu0 0.0
        %1194 = vmatprep.subr.mxu0 0.0
        %1195 = vmatpush1.msra.mxu0 0.0
        %1196 = vmatprep.subr.mxu0 0.0
        %1197 = vmatpush1.msra.mxu0 0.0
        %1198 = vmatprep.subr.mxu0 0.0
        %1199 = vmatpush1.msra.mxu0 0.0
        %1200 = vmatprep.subr.mxu0 0.0
        %1201 = vmatpush1.msra.mxu0 0.0
        %1202 = vmatprep.subr.mxu0 0.0
        %1203 = vmatpush1.msra.mxu0 0.0
        %1204 = vmatprep.subr.mxu0 0.0
        %1205 = vmatpush1.msra.mxu0 0.0
        %1206 = vmatprep.subr.mxu0 0.0
        %1207 = vmatpush1.msra.mxu0 0.0
        %1208 = vmatprep.subr.mxu0 0.0
        %1209 = vmatpush1.msra.mxu0 0.0
        %1210 = vmatprep.subr.mxu0 0.0
        %1211 = vmatpush1.msra.mxu0 0.0
        %1212 = vmatprep.subr.mxu0 0.0
        %1213 = vmatpush1.msra.mxu0 0.0
        %1214 = vmatprep.subr.mxu0 0.0
        %1215 = vmatpush1.msra.mxu0 0.0
        %1216 = vmatprep.subr.mxu0 0.0
        %1217 = vmatpush1.msra.mxu0 0.0
        %1218 = vmatprep.subr.mxu0 0.0
        %1219 = vmatpush1.msra.mxu0 0.0
        %1220 = vmatprep.mubr.f32.mxu0 0.0
        %1221 = vmatmul.mubr.f32.gmra.mrb[0].mxu0 %v1151
        %v1222 = vpop.f32.mrb[0].mxu0
        %v1223 = vadd.f32 0.0, %v1222
        %v1224 = vpop.f32.mrb[0].mxu0
        %1225 = vmatprep.mubr.f32.mxu0 0.0
        %1226 = vmatmul.mubr.f32.gmra.mrb[0].mxu0 %v1154
        %v1227 = vpop.f32.mrb[0].mxu0
        %v1228 = vadd.f32 0.0, %v1227
        %v1229 = vpop.f32.mrb[0].mxu0
        %1230 = vdwg.mxu0
        %v1232 = vcombine.high %v1223, %v1223
        %v1234 = vunpack.c.l.s4 1966171168
        %v1235 = vunpack.c.0.s8 %v1234
        %v1236 = vlaneseq
        %v1237 = vshrl.u32 %v1236, 7
        %v1238 = vsub.s32 %v1235, %v1237
        %v1239 = vrot.slane %v1223, %v1238
        %v1241 = vunpack.c.l.s4 1966171168
        %v1242 = vunpack.c.0.s8 %v1241
        %v1243 = vlaneseq
        %v1244 = vshrl.u32 %v1243, 7
        %v1245 = vsub.s32 %v1242, %v1244
        %v1246 = vrot.slane %v1232, %v1245
        %v1247 = vcombine.high %v1239, %v1239
        %v1248 = vcombine.high %v1246, %v1246
        %v1250 = vunpack.c.l.s4 1966171168
        %v1251 = vunpack.c.0.s8 %v1250
        %v1252 = vlaneseq
        %v1253 = vshrl.u32 %v1252, 7
        %v1254 = vsub.s32 %v1251, %v1253
        %v1255 = vrot.slane %v1239, %v1254
        %v1257 = vunpack.c.l.s4 1966171168
        %v1258 = vunpack.c.0.s8 %v1257
        %v1259 = vlaneseq
        %v1260 = vshrl.u32 %v1259, 7
        %v1261 = vsub.s32 %v1258, %v1260
        %v1262 = vrot.slane %v1246, %v1261
        %v1264 = vunpack.c.l.s4 1966171168
        %v1265 = vunpack.c.0.s8 %v1264
        %v1266 = vlaneseq
        %v1267 = vshrl.u32 %v1266, 7
        %v1268 = vsub.s32 %v1265, %v1267
        %v1269 = vrot.slane %v1247, %v1268
        %v1271 = vunpack.c.l.s4 1966171168
        %v1272 = vunpack.c.0.s8 %v1271
        %v1273 = vlaneseq
        %v1274 = vshrl.u32 %v1273, 7
        %v1275 = vsub.s32 %v1272, %v1274
        %v1276 = vrot.slane %v1248, %v1275
        %v1277 = vcombine.high %v1255, %v1255
        %v1278 = vcombine.high %v1262, %v1262
        %v1279 = vcombine.high %v1269, %v1269
        %v1280 = vcombine.high %v1276, %v1276
        %1289 = vst [vmem:[%s635] sm:$0x1] %v1255
        %1290 = vst [vmem:[%s635 + $0x2] sm:$0x1] %v1269
        %1291 = vst [vmem:[%s635 + $0x4] sm:$0x1] %v1277
        %1292 = vst [vmem:[%s635 + $0x6] sm:$0x1] %v1279
        %1293 = vst [vmem:[%s635 + $0x8] sm:$0x1] %v1262
        %1294 = vst [vmem:[%s635 + $0xa] sm:$0x1] %v1276
        %1295 = vst [vmem:[%s635 + $0xc] sm:$0x1] %v1278
        %1296 = vst [vmem:[%s635 + $0xe] sm:$0x1] %v1280
        %v1298 = vcombine.high %v1228, %v1228
        %v1300 = vunpack.c.l.s4 1966171168
        %v1301 = vunpack.c.0.s8 %v1300
        %v1302 = vlaneseq
        %v1303 = vshrl.u32 %v1302, 7
        %v1304 = vsub.s32 %v1301, %v1303
        %v1305 = vrot.slane %v1228, %v1304
        %v1307 = vunpack.c.l.s4 1966171168
        %v1308 = vunpack.c.0.s8 %v1307
        %v1309 = vlaneseq
        %v1310 = vshrl.u32 %v1309, 7
        %v1311 = vsub.s32 %v1308, %v1310
        %v1312 = vrot.slane %v1298, %v1311
        %v1313 = vcombine.high %v1305, %v1305
        %v1314 = vcombine.high %v1312, %v1312
        %v1316 = vunpack.c.l.s4 1966171168
        %v1317 = vunpack.c.0.s8 %v1316
        %v1318 = vlaneseq
        %v1319 = vshrl.u32 %v1318, 7
        %v1320 = vsub.s32 %v1317, %v1319
        %v1321 = vrot.slane %v1305, %v1320
        %v1323 = vunpack.c.l.s4 1966171168
        %v1324 = vunpack.c.0.s8 %v1323
        %v1325 = vlaneseq
        %v1326 = vshrl.u32 %v1325, 7
        %v1327 = vsub.s32 %v1324, %v1326
        %v1328 = vrot.slane %v1312, %v1327
        %v1330 = vunpack.c.l.s4 1966171168
        %v1331 = vunpack.c.0.s8 %v1330
        %v1332 = vlaneseq
        %v1333 = vshrl.u32 %v1332, 7
        %v1334 = vsub.s32 %v1331, %v1333
        %v1335 = vrot.slane %v1313, %v1334
        %v1337 = vunpack.c.l.s4 1966171168
        %v1338 = vunpack.c.0.s8 %v1337
        %v1339 = vlaneseq
        %v1340 = vshrl.u32 %v1339, 7
        %v1341 = vsub.s32 %v1338, %v1340
        %v1342 = vrot.slane %v1314, %v1341
        %v1343 = vcombine.high %v1321, %v1321
        %v1344 = vcombine.high %v1328, %v1328
        %v1345 = vcombine.high %v1335, %v1335
        %v1346 = vcombine.high %v1342, %v1342
        %1355 = vst [vmem:[%s635 + $0x1] sm:$0x1] %v1321
        %1356 = vst [vmem:[%s635 + $0x3] sm:$0x1] %v1335
        %1357 = vst [vmem:[%s635 + $0x5] sm:$0x1] %v1343
        %1358 = vst [vmem:[%s635 + $0x7] sm:$0x1] %v1345
        %1359 = vst [vmem:[%s635 + $0x9] sm:$0x1] %v1328
        %1360 = vst [vmem:[%s635 + $0xb] sm:$0x1] %v1342
        %1361 = vst [vmem:[%s635 + $0xd] sm:$0x1] %v1344
        %1362 = vst [vmem:[%s635 + $0xf] sm:$0x1] %v1346
        %s1363 = sand.u32 %s369, 1
        %s1364 = scalar_lea.sflag [#allocation5], %s1363
        %s1365 = sand.u32 %s369, 1
        %s1366 = smul.addr %s1365, 32
        %s1367 = scalar_lea.vmem [#allocation14], %s1366
        %s1368 = sand.u32 %s397, 1
        %s1369 = scalar_lea.sflag [#allocation16], %s1368
        %s1370 = sand.u32 %s397, 1
        %s1371 = smul.addr %s1370, 16
        %s1372 = scalar_lea.vmem [#allocation15], %s1371
        // Predicated region
        $region105: #{tpu_custom_call.1} parent=75 // pred_check
          %p1373 = pneg %p379
        $region106: #{tpu_custom_call.1} parent=75 // pred_check_branch
          %1375 = sbr.rel (%p1373) target = $region108
        $region107: #{tpu_custom_call.1} parent=75 // pred_region
          %s1377 = ssub.s32 512, 512
          %1378 = vsyncadd %s1364, %s1377
          %s1379 = smul.addr %s45, 8
          %s1380 = sadd.s32 %s46, %s1379
          %s1381 = smul.addr %s1380, 128
          %s1382 = scalar_lea.hbm %s14, %s1381
          %s1383 = sshll.u32 %s1367, 4
          %s1384 = int_to_ptr.vmem [resolvable:$true] %s1383
          %1389 = dma.vmem_to_hbm [thread:$0]  %s1384, 512, %s1382, %s1364, 128, 256, 8
        $region108: #{tpu_custom_call.1} parent=75 // pred_fallthru
          _
        // Predicated region
        $region109: #{tpu_custom_call.1} parent=75 // pred_check
          %p1390 = pneg %p407
        $region110: #{tpu_custom_call.1} parent=75 // pred_check_branch
          %1392 = sbr.rel (%p1390) target = $region112
        $region111: #{tpu_custom_call.1} parent=75 // pred_region
          %s1394 = ssub.s32 256, 256
          %1395 = vsyncadd %s1369, %s1394
          %s1396 = smul.addr %s45, 16
          %s1397 = sadd.s32 %s46, %s1396
          %s1398 = smul.addr %s1397, 32
          %s1399 = scalar_lea.hbm %s15, %s1398
          %s1400 = sshll.u32 %s1372, 4
          %s1401 = int_to_ptr.vmem [resolvable:$true] %s1400
          %1406 = dma.vmem_to_hbm [thread:$0]  %s1401, 256, %s1399, %s1369, 32, 64, 2
        $region112: #{tpu_custom_call.1} parent=75 // pred_fallthru
          _
      $region76: #{tpu_custom_call.1} parent=5 // pred_fallthru
        _
      %p1407 = scmp.le.s32.totalorder 2, %s36
      // Predicated region
      $region113: #{tpu_custom_call.1} parent=5 // pred_check
        %p1408 = pneg %p1407
      $region114: #{tpu_custom_call.1} parent=5 // pred_check_branch
        %1410 = sbr.rel (%p1408) target = $region116
      $region115: #{tpu_custom_call.1} parent=5 // pred_region
        %s1411 = ssub.s32 %s36, 2
        // Predicated region
        $region117: #{tpu_custom_call.1} parent=115 // pred_check
          %p1412 = pneg %p385
        $region118: #{tpu_custom_call.1} parent=115 // pred_check_branch
          %1414 = sbr.rel (%p1412) target = $region120
        $region119: #{tpu_custom_call.1} parent=115 // pred_region
          %s1415 = sand.u32 %s370, 1
          %s1416 = scalar_lea.sflag [#allocation5], %s1415
          %s1417 = sand.u32 %s370, 1
          %s1418 = smul.addr %s1417, 32
          %s1419 = scalar_lea.vmem [#allocation14], %s1418
          %1420 = dma.done %s1416, 512
        $region120: #{tpu_custom_call.1} parent=115 // pred_fallthru
          _
        // Predicated region
        $region121: #{tpu_custom_call.1} parent=115 // pred_check
          %p1421 = pneg %p413
        $region122: #{tpu_custom_call.1} parent=115 // pred_check_branch
          %1423 = sbr.rel (%p1421) target = $region124
        $region123: #{tpu_custom_call.1} parent=115 // pred_region
          %s1424 = sand.u32 %s398, 1
          %s1425 = scalar_lea.sflag [#allocation16], %s1424
          %s1426 = sand.u32 %s398, 1
          %s1427 = smul.addr %s1426, 16
          %s1428 = scalar_lea.vmem [#allocation15], %s1427
          %1429 = dma.done %s1425, 256
        $region124: #{tpu_custom_call.1} parent=115 // pred_fallthru
          _
      $region116: #{tpu_custom_call.1} parent=5 // pred_fallthru
        _
    $region6: #{tpu_custom_call.1} parent=1 // loop_footer
      %s40 = sadd.s32 1, %s36
    $region7: #{tpu_custom_call.1} parent=1 // loop_footer_branch
      %35 = sbr.rel target = $region3
    $region8: #{tpu_custom_call.1} parent=1 // loop_exit
      _
    %1430 = vsyncpa [#allocation4], 1
    %s1431 = scalar_lea.sflag [#allocation4], 1
    %1432 = vsyncpa %s1431, 1
    %1433 = vsyncpa [#allocation7], 1
    %s1434 = scalar_lea.sflag [#allocation7], 1
    %1435 = vsyncpa %s1434, 1
    %1436 = vsyncpa [#allocation10], 1
    %1437 = vsyncpa [#allocation13], 1
    %1438 = vsyncpa [#allocation5], 1
    %s1439 = scalar_lea.sflag [#allocation5], 1
    %1440 = vsyncpa %s1439, 1
    %1441 = vsyncpa [#allocation16], 1
    %s1442 = scalar_lea.sflag [#allocation16], 1
    %1443 = vsyncpa %s1442, 1

</llo_original>
